<compile_context>
chip_gen: v5e
topology: v5e:2x2
jax: 0.10.0
libtpu: 0.0.40
codegen_flags: <defaults>
</compile_context>

<pallas_src>
import math

import jax
import jax.numpy as jnp
from jax.experimental import pallas as pl
from jax.experimental.pallas import tpu as pltpu

LANE = 128
SUBLANE = 8
BN_EPS = 1e-5  # nn.BatchNorm1d default eps


def _pad_to(n, m):
    return ((n + m - 1) // m) * m


def _make_vae_kernel(n_enc, n_dec):
    """Builds the fused VAE kernel for a given number of enc/dec hidden layers.

    Ref order:
      inputs : x, eps,
               [enc_wt_i, enc_b_i] * n_enc,
               enc_mu_wt, enc_mu_b, enc_lv_wt, enc_lv_b,
               [dec_wt_i, dec_b_i] * n_dec,
               dec_mu_wt, dec_mu_b, dec_lv_wt, dec_lv_b
      outputs: z, enc_mu, enc_logvar, dec_mu, dec_logvar
    """

    def kernel(*refs):
        it = iter(refs)
        x_ref = next(it)
        eps_ref = next(it)
        enc_layers = [(next(it), next(it)) for _ in range(n_enc)]
        wemu, bemu = next(it), next(it)
        welv, belv = next(it), next(it)
        dec_layers = [(next(it), next(it)) for _ in range(n_dec)]
        wdmu, bdmu = next(it), next(it)
        wdlv, bdlv = next(it), next(it)
        z_ref, emu_ref, elv_ref, dmu_ref, dlv_ref = (next(it) for _ in range(5))

        def linear(h, wt_ref, b_ref):
            return (
                jnp.dot(h, wt_ref[...], preferred_element_type=jnp.float32)
                + b_ref[...]
            )

        # ---- encoder (Linear + folded-BN + tanh; Dropout = identity) ----
        h = x_ref[...].astype(jnp.float32)
        for wt, b in enc_layers:
            h = jnp.tanh(linear(h, wt, b))

        # ---- latent heads + reparameterize ----
        mu = linear(h, wemu, bemu)
        lv = linear(h, welv, belv)
        z = mu + eps_ref[...].astype(jnp.float32) * jnp.exp(0.5 * lv)

        # ---- decoder ----
        d = z
        for wt, b in dec_layers:
            d = jnp.tanh(linear(d, wt, b))
        dmu = linear(d, wdmu, bdmu)
        dlv = linear(d, wdlv, bdlv)

        z_ref[...] = z.astype(z_ref.dtype)
        emu_ref[...] = mu.astype(emu_ref.dtype)
        elv_ref[...] = lv.astype(elv_ref.dtype)
        dmu_ref[...] = dmu.astype(dmu_ref.dtype)
        dlv_ref[...] = dlv.astype(dlv_ref.dtype)

    return kernel


def vae_forward(x, eps, params, *, block_b=None):
    """Pallas VAE forward. Returns (z, enc_mu, enc_logvar, x_hat, dec_mu, dec_logvar)."""
    dtype = x.dtype
    B, in_dim = x.shape
    latent = params["enc_mu"][0].shape[0]
    out_dim = params["dec_mu"][0].shape[0]
    assert eps.shape == (B, latent)

    # eval-mode BatchNorm with default running stats (mean=0, var=1, gamma=1,
    # beta=0) reduces to a scalar scale which we fold into the linear.
    bn_scale = 1.0 / math.sqrt(1.0 + BN_EPS)

    def prep(Wb, fold_bn):
        W, b = Wb
        o, i = W.shape
        if fold_bn:
            W = W * bn_scale
            b = b * bn_scale
        ip, op = _pad_to(i, LANE), _pad_to(o, LANE)
        wt = jnp.zeros((ip, op), W.dtype).at[:i, :o].set(W.T)  # (In_pad, Out_pad)
        bp = jnp.zeros((1, op), b.dtype).at[0, :o].set(b)      # (1, Out_pad)
        return wt, bp

    enc = [prep(p, True) for p in params["enc"]]
    emu = prep(params["enc_mu"], False)
    elv = prep(params["enc_logvar"], False)
    dec = [prep(p, True) for p in params["dec"]]
    dmu = prep(params["dec_mu"], False)
    dlv = prep(params["dec_logvar"], False)

    in_pad = _pad_to(in_dim, LANE)
    lat_pad = _pad_to(latent, LANE)
    out_pad = _pad_to(out_dim, LANE)

    # Batch tiling: lets Pallas double-buffer input/output tiles and shard the
    # "parallel" axis across TensorCores when there is more than one tile.
    if block_b is None:
        block_b = min(_pad_to(B, SUBLANE), 256)
    assert block_b % SUBLANE == 0
    B_pad = _pad_to(B, block_b)

    x_p = jnp.zeros((B_pad, in_pad), dtype).at[:B, :in_dim].set(x)
    eps_p = jnp.zeros((B_pad, lat_pad), dtype).at[:B, :latent].set(eps)

    weight_args = []
    for wt, bp in [*enc, emu, elv, *dec, dmu, dlv]:
        weight_args += [wt, bp]

    grid = (B_pad // block_b,)

    def tile_spec(last_dim):
        return pl.BlockSpec((block_b, last_dim), lambda i: (i, 0))

    def resident_spec(arr):
        # Constant index map -> block stays VMEM-resident across batch tiles.
        return pl.BlockSpec(arr.shape, lambda i: (0, 0))

    in_specs = [tile_spec(in_pad), tile_spec(lat_pad)] + [
        resident_spec(a) for a in weight_args
    ]
    out_specs = (
        tile_spec(lat_pad),  # z
        tile_spec(lat_pad),  # enc_mu
        tile_spec(lat_pad),  # enc_logvar
        tile_spec(out_pad),  # dec_mu (== x_hat)
        tile_spec(out_pad),  # dec_logvar
    )
    out_shape = (
        jax.ShapeDtypeStruct((B_pad, lat_pad), dtype),
        jax.ShapeDtypeStruct((B_pad, lat_pad), dtype),
        jax.ShapeDtypeStruct((B_pad, lat_pad), dtype),
        jax.ShapeDtypeStruct((B_pad, out_pad), dtype),
        jax.ShapeDtypeStruct((B_pad, out_pad), dtype),
    )

    # Advisory cost estimate so XLA can overlap this call with neighbours.
    all_wts = weight_args[0::2]
    flops = int(2 * B_pad * sum(w.shape[0] * w.shape[1] for w in all_wts))
    transcendentals = int(
        B_pad * (sum(w.shape[1] for w, _b in enc + dec) + lat_pad)
    )
    out_elems = 3 * B_pad * lat_pad + 2 * B_pad * out_pad
    bytes_accessed = int(
        4 * (x_p.size + eps_p.size + sum(a.size for a in weight_args) + out_elems)
    )

    kernel = _make_vae_kernel(len(enc), len(dec))

    z_p, emu_p, elv_p, dmu_p, dlv_p = pl.pallas_call(
        kernel,
        out_shape=out_shape,
        grid_spec=pl.GridSpec(grid=grid, in_specs=in_specs, out_specs=out_specs),
        compiler_params=pltpu.CompilerParams(dimension_semantics=("parallel",)),
        cost_estimate=pl.CostEstimate(
            flops=flops,
            transcendentals=transcendentals,
            bytes_accessed=bytes_accessed,
        ),
    )(x_p, eps_p, *weight_args)

    z = z_p[:B, :latent]
    enc_mu = emu_p[:B, :latent]
    enc_logvar = elv_p[:B, :latent]
    dec_mu_o = dmu_p[:B, :out_dim]
    dec_logvar_o = dlv_p[:B, :out_dim]
    x_hat = dec_mu_o  # matches PyTorch: x_hat = dec_mu
    return z, enc_mu, enc_logvar, x_hat, dec_mu_o, dec_logvar_o


# ----------------------------------------------------------------------------
# Parameter init mirroring VAE.reset_parameters (uniform(-stdv, stdv),
# stdv = 1/sqrt(fan_in)) and a pure-JAX reference for correctness checking.
# ----------------------------------------------------------------------------
def init_vae_params(key, hiddens, dtype=jnp.float32):
    def linear_init(k, out_d, in_d):
        stv = 1.0 / math.sqrt(in_d)
        kw, kb = jax.random.split(k)
        W = jax.random.uniform(kw, (out_d, in_d), dtype, minval=-stv, maxval=stv)
        b = jax.random.uniform(kb, (out_d,), dtype, minval=-stv, maxval=stv)
        return W, b

    n_layers = 2 * (len(hiddens) - 2) + 4
    keys = list(jax.random.split(key, n_layers))
    params = {"enc": [], "dec": []}
    ki = 0
    for i in range(len(hiddens) - 2):
        params["enc"].append(linear_init(keys[ki], hiddens[i + 1], hiddens[i]))
        ki += 1
    params["enc_mu"] = linear_init(keys[ki], hiddens[-1], hiddens[-2]); ki += 1
    params["enc_logvar"] = linear_init(keys[ki], hiddens[-1], hiddens[-2]); ki += 1
    for i in list(range(len(hiddens)))[::-1][:-2]:
        params["dec"].append(linear_init(keys[ki], hiddens[i - 1], hiddens[i]))
        ki += 1
    params["dec_mu"] = linear_init(keys[ki], hiddens[0], hiddens[1]); ki += 1
    params["dec_logvar"] = linear_init(keys[ki], hiddens[0], hiddens[1]); ki += 1
    return params


def vae_reference(x, eps, params):
    P = jax.lax.Precision.HIGHEST
    bn_scale = 1.0 / math.sqrt(1.0 + BN_EPS)
    h = x
    for W, b in params["enc"]:
        h = jnp.tanh(bn_scale * (jnp.dot(h, W.T, precision=P) + b))
    mu = jnp.dot(h, params["enc_mu"][0].T, precision=P) + params["enc_mu"][1]
    lv = jnp.dot(h, params["enc_logvar"][0].T, precision=P) + params["enc_logvar"][1]
    z = mu + eps * jnp.exp(0.5 * lv)
    d = z
    for W, b in params["dec"]:
        d = jnp.tanh(bn_scale * (jnp.dot(d, W.T, precision=P) + b))
    dmu = jnp.dot(d, params["dec_mu"][0].T, precision=P) + params["dec_mu"][1]
    dlv = jnp.dot(d, params["dec_logvar"][0].T, precision=P) + params["dec_logvar"][1]
    return z, mu, lv, dmu, dmu, dlv


if __name__ == "__main__":
    key = jax.random.PRNGKey(0)
    k_x, k_eps, k_param = jax.random.split(key, 3)

    hiddens = [64, 32, 16]  # args.vae_hiddens: input 64 -> hidden 32 -> latent 16
    batch = 64

    params = init_vae_params(k_param, hiddens)
    x = jax.random.normal(k_x, (batch, hiddens[0]), jnp.float32)
    eps = jax.random.normal(k_eps, (batch, hiddens[-1]), jnp.float32)

    # block_b=16 -> 4 batch tiles: exercises the pipelined, parallel grid path.
    outs = vae_forward(x, eps, params, block_b=16)
    outs = jax.block_until_ready(outs)

    refs = vae_reference(x, eps, params)
    names = ["z", "enc_mu", "enc_logvar", "x_hat", "dec_mu", "dec_logvar"]
    for name, got, want in zip(names, outs, refs):
        assert got.shape == want.shape, (name, got.shape, want.shape)
        assert jnp.allclose(got, want, atol=1e-3, rtol=1e-3), name

    print("KERNEL_OK")
</pallas_src>

<mosaic_0001>
module attributes {stable_mosaic.version = 11 : i64} {
  func.func @kernel(%arg0: i32, %arg1: memref<16x128xf32, #tpu.memory_space<vmem>>, %arg2: memref<16x128xf32, #tpu.memory_space<vmem>>, %arg3: memref<128x128xf32, #tpu.memory_space<vmem>>, %arg4: memref<1x128xf32, #tpu.memory_space<vmem>>, %arg5: memref<128x128xf32, #tpu.memory_space<vmem>>, %arg6: memref<1x128xf32, #tpu.memory_space<vmem>>, %arg7: memref<128x128xf32, #tpu.memory_space<vmem>>, %arg8: memref<1x128xf32, #tpu.memory_space<vmem>>, %arg9: memref<128x128xf32, #tpu.memory_space<vmem>>, %arg10: memref<1x128xf32, #tpu.memory_space<vmem>>, %arg11: memref<128x128xf32, #tpu.memory_space<vmem>>, %arg12: memref<1x128xf32, #tpu.memory_space<vmem>>, %arg13: memref<128x128xf32, #tpu.memory_space<vmem>>, %arg14: memref<1x128xf32, #tpu.memory_space<vmem>>, %arg15: memref<16x128xf32, #tpu.memory_space<vmem>>, %arg16: memref<16x128xf32, #tpu.memory_space<vmem>>, %arg17: memref<16x128xf32, #tpu.memory_space<vmem>>, %arg18: memref<16x128xf32, #tpu.memory_space<vmem>>, %arg19: memref<16x128xf32, #tpu.memory_space<vmem>>) attributes {dimension_semantics = [#tpu.dimension_semantics<parallel>], iteration_bounds = array<i64: 4>, scalar_prefetch = 0 : i64, scratch_operands = 0 : i64, tpu.core_type = #tpu.core_type<tc>, window_params = [{transform_indices = @transform_0, window_bounds = array<i64: 16, 128>}, {transform_indices = @transform_1, window_bounds = array<i64: 16, 128>}, {pipeline_mode = #tpu.pipeline_mode<synchronous>, transform_indices = @transform_2, window_bounds = array<i64: 128, 128>}, {pipeline_mode = #tpu.pipeline_mode<synchronous>, transform_indices = @transform_3, window_bounds = array<i64: 1, 128>}, {pipeline_mode = #tpu.pipeline_mode<synchronous>, transform_indices = @transform_4, window_bounds = array<i64: 128, 128>}, {pipeline_mode = #tpu.pipeline_mode<synchronous>, transform_indices = @transform_5, window_bounds = array<i64: 1, 128>}, {pipeline_mode = #tpu.pipeline_mode<synchronous>, transform_indices = @transform_6, window_bounds = array<i64: 128, 128>}, {pipeline_mode = #tpu.pipeline_mode<synchronous>, transform_indices = @transform_7, window_bounds = array<i64: 1, 128>}, {pipeline_mode = #tpu.pipeline_mode<synchronous>, transform_indices = @transform_8, window_bounds = array<i64: 128, 128>}, {pipeline_mode = #tpu.pipeline_mode<synchronous>, transform_indices = @transform_9, window_bounds = array<i64: 1, 128>}, {pipeline_mode = #tpu.pipeline_mode<synchronous>, transform_indices = @transform_10, window_bounds = array<i64: 128, 128>}, {pipeline_mode = #tpu.pipeline_mode<synchronous>, transform_indices = @transform_11, window_bounds = array<i64: 1, 128>}, {pipeline_mode = #tpu.pipeline_mode<synchronous>, transform_indices = @transform_12, window_bounds = array<i64: 128, 128>}, {pipeline_mode = #tpu.pipeline_mode<synchronous>, transform_indices = @transform_13, window_bounds = array<i64: 1, 128>}, {transform_indices = @transform_14, window_bounds = array<i64: 16, 128>}, {transform_indices = @transform_15, window_bounds = array<i64: 16, 128>}, {transform_indices = @transform_16, window_bounds = array<i64: 16, 128>}, {transform_indices = @transform_17, window_bounds = array<i64: 16, 128>}, {transform_indices = @transform_18, window_bounds = array<i64: 16, 128>}]} {
    %c0 = arith.constant 0 : index
    %c0_0 = arith.constant 0 : index
    %0 = vector.load %arg1[%c0, %c0_0] : memref<16x128xf32, #tpu.memory_space<vmem>>, vector<16x128xf32>
    %c0_1 = arith.constant 0 : index
    %c0_2 = arith.constant 0 : index
    %1 = vector.load %arg3[%c0_1, %c0_2] : memref<128x128xf32, #tpu.memory_space<vmem>>, vector<128x128xf32>
    %cst = arith.constant dense<0.000000e+00> : vector<16x128xf32>
    %2 = tpu.matmul %0, %1, %cst {dimension_numbers = #tpu.dot_dimension_numbers<[1], [0], [0], [1], [0, 0, 1, 1], [], []>} : vector<16x128xf32>, vector<128x128xf32>, vector<16x128xf32> -> vector<16x128xf32>
    %c0_3 = arith.constant 0 : index
    %c0_4 = arith.constant 0 : index
    %3 = vector.load %arg4[%c0_3, %c0_4] : memref<1x128xf32, #tpu.memory_space<vmem>>, vector<1x128xf32>
    %4 = vector.broadcast %3 : vector<1x128xf32> to vector<16x128xf32>
    %5 = arith.addf %2, %4 : vector<16x128xf32>
    %6 = math.tanh %5 : vector<16x128xf32>
    %c0_5 = arith.constant 0 : index
    %c0_6 = arith.constant 0 : index
    %7 = vector.load %arg5[%c0_5, %c0_6] : memref<128x128xf32, #tpu.memory_space<vmem>>, vector<128x128xf32>
    %cst_7 = arith.constant dense<0.000000e+00> : vector<16x128xf32>
    %8 = tpu.matmul %6, %7, %cst_7 {dimension_numbers = #tpu.dot_dimension_numbers<[1], [0], [0], [1], [0, 0, 1, 1], [], []>} : vector<16x128xf32>, vector<128x128xf32>, vector<16x128xf32> -> vector<16x128xf32>
    %c0_8 = arith.constant 0 : index
    %c0_9 = arith.constant 0 : index
    %9 = vector.load %arg6[%c0_8, %c0_9] : memref<1x128xf32, #tpu.memory_space<vmem>>, vector<1x128xf32>
    %10 = vector.broadcast %9 : vector<1x128xf32> to vector<16x128xf32>
    %11 = arith.addf %8, %10 : vector<16x128xf32>
    %c0_10 = arith.constant 0 : index
    %c0_11 = arith.constant 0 : index
    %12 = vector.load %arg7[%c0_10, %c0_11] : memref<128x128xf32, #tpu.memory_space<vmem>>, vector<128x128xf32>
    %cst_12 = arith.constant dense<0.000000e+00> : vector<16x128xf32>
    %13 = tpu.matmul %6, %12, %cst_12 {dimension_numbers = #tpu.dot_dimension_numbers<[1], [0], [0], [1], [0, 0, 1, 1], [], []>} : vector<16x128xf32>, vector<128x128xf32>, vector<16x128xf32> -> vector<16x128xf32>
    %c0_13 = arith.constant 0 : index
    %c0_14 = arith.constant 0 : index
    %14 = vector.load %arg8[%c0_13, %c0_14] : memref<1x128xf32, #tpu.memory_space<vmem>>, vector<1x128xf32>
    %15 = vector.broadcast %14 : vector<1x128xf32> to vector<16x128xf32>
    %16 = arith.addf %13, %15 : vector<16x128xf32>
    %c0_15 = arith.constant 0 : index
    %c0_16 = arith.constant 0 : index
    %17 = vector.load %arg2[%c0_15, %c0_16] : memref<16x128xf32, #tpu.memory_space<vmem>>, vector<16x128xf32>
    %cst_17 = arith.constant 5.000000e-01 : f32
    %18 = vector.broadcast %cst_17 : f32 to vector<16x128xf32>
    %19 = arith.mulf %18, %16 : vector<16x128xf32>
    %20 = math.exp %19 : vector<16x128xf32>
    %21 = arith.mulf %17, %20 : vector<16x128xf32>
    %22 = arith.addf %11, %21 : vector<16x128xf32>
    %c0_18 = arith.constant 0 : index
    %c0_19 = arith.constant 0 : index
    %23 = vector.load %arg9[%c0_18, %c0_19] : memref<128x128xf32, #tpu.memory_space<vmem>>, vector<128x128xf32>
    %cst_20 = arith.constant dense<0.000000e+00> : vector<16x128xf32>
    %24 = tpu.matmul %22, %23, %cst_20 {dimension_numbers = #tpu.dot_dimension_numbers<[1], [0], [0], [1], [0, 0, 1, 1], [], []>} : vector<16x128xf32>, vector<128x128xf32>, vector<16x128xf32> -> vector<16x128xf32>
    %c0_21 = arith.constant 0 : index
    %c0_22 = arith.constant 0 : index
    %25 = vector.load %arg10[%c0_21, %c0_22] : memref<1x128xf32, #tpu.memory_space<vmem>>, vector<1x128xf32>
    %26 = vector.broadcast %25 : vector<1x128xf32> to vector<16x128xf32>
    %27 = arith.addf %24, %26 : vector<16x128xf32>
    %28 = math.tanh %27 : vector<16x128xf32>
    %c0_23 = arith.constant 0 : index
    %c0_24 = arith.constant 0 : index
    %29 = vector.load %arg11[%c0_23, %c0_24] : memref<128x128xf32, #tpu.memory_space<vmem>>, vector<128x128xf32>
    %cst_25 = arith.constant dense<0.000000e+00> : vector<16x128xf32>
    %30 = tpu.matmul %28, %29, %cst_25 {dimension_numbers = #tpu.dot_dimension_numbers<[1], [0], [0], [1], [0, 0, 1, 1], [], []>} : vector<16x128xf32>, vector<128x128xf32>, vector<16x128xf32> -> vector<16x128xf32>
    %c0_26 = arith.constant 0 : index
    %c0_27 = arith.constant 0 : index
    %31 = vector.load %arg12[%c0_26, %c0_27] : memref<1x128xf32, #tpu.memory_space<vmem>>, vector<1x128xf32>
    %32 = vector.broadcast %31 : vector<1x128xf32> to vector<16x128xf32>
    %33 = arith.addf %30, %32 : vector<16x128xf32>
    %c0_28 = arith.constant 0 : index
    %c0_29 = arith.constant 0 : index
    %34 = vector.load %arg13[%c0_28, %c0_29] : memref<128x128xf32, #tpu.memory_space<vmem>>, vector<128x128xf32>
    %cst_30 = arith.constant dense<0.000000e+00> : vector<16x128xf32>
    %35 = tpu.matmul %28, %34, %cst_30 {dimension_numbers = #tpu.dot_dimension_numbers<[1], [0], [0], [1], [0, 0, 1, 1], [], []>} : vector<16x128xf32>, vector<128x128xf32>, vector<16x128xf32> -> vector<16x128xf32>
    %c0_31 = arith.constant 0 : index
    %c0_32 = arith.constant 0 : index
    %36 = vector.load %arg14[%c0_31, %c0_32] : memref<1x128xf32, #tpu.memory_space<vmem>>, vector<1x128xf32>
    %37 = vector.broadcast %36 : vector<1x128xf32> to vector<16x128xf32>
    %38 = arith.addf %35, %37 : vector<16x128xf32>
    %c0_33 = arith.constant 0 : index
    %c0_34 = arith.constant 0 : index
    %39 = vector.load %arg15[%c0_33, %c0_34] : memref<16x128xf32, #tpu.memory_space<vmem>>, vector<16x128xf32>
    tpu.vector_store %arg15[%c0_33, %c0_34], %22 {strides = array<i32>} : memref<16x128xf32, #tpu.memory_space<vmem>>, vector<16x128xf32>,
    %c0_35 = arith.constant 0 : index
    %c0_36 = arith.constant 0 : index
    %40 = vector.load %arg16[%c0_35, %c0_36] : memref<16x128xf32, #tpu.memory_space<vmem>>, vector<16x128xf32>
    tpu.vector_store %arg16[%c0_35, %c0_36], %11 {strides = array<i32>} : memref<16x128xf32, #tpu.memory_space<vmem>>, vector<16x128xf32>,
    %c0_37 = arith.constant 0 : index
    %c0_38 = arith.constant 0 : index
    %41 = vector.load %arg17[%c0_37, %c0_38] : memref<16x128xf32, #tpu.memory_space<vmem>>, vector<16x128xf32>
    tpu.vector_store %arg17[%c0_37, %c0_38], %16 {strides = array<i32>} : memref<16x128xf32, #tpu.memory_space<vmem>>, vector<16x128xf32>,
    %c0_39 = arith.constant 0 : index
    %c0_40 = arith.constant 0 : index
    %42 = vector.load %arg18[%c0_39, %c0_40] : memref<16x128xf32, #tpu.memory_space<vmem>>, vector<16x128xf32>
    tpu.vector_store %arg18[%c0_39, %c0_40], %33 {strides = array<i32>} : memref<16x128xf32, #tpu.memory_space<vmem>>, vector<16x128xf32>,
    %c0_41 = arith.constant 0 : index
    %c0_42 = arith.constant 0 : index
    %43 = vector.load %arg19[%c0_41, %c0_42] : memref<16x128xf32, #tpu.memory_space<vmem>>, vector<16x128xf32>
    tpu.vector_store %arg19[%c0_41, %c0_42], %38 {strides = array<i32>} : memref<16x128xf32, #tpu.memory_space<vmem>>, vector<16x128xf32>,
    return
  }
  func.func @transform_0(%arg0: i32) -> (i32, i32) {
    %c0_i32 = arith.constant 0 : i32
    %c0_i32_0 = arith.constant 0 : i32
    return %arg0, %c0_i32 : i32, i32
  }
  func.func @transform_1(%arg0: i32) -> (i32, i32) {
    %c0_i32 = arith.constant 0 : i32
    %c0_i32_0 = arith.constant 0 : i32
    return %arg0, %c0_i32 : i32, i32
  }
  func.func @transform_2(%arg0: i32) -> (i32, i32) {
    %c0_i32 = arith.constant 0 : i32
    %c0_i32_0 = arith.constant 0 : i32
    %c0_i32_1 = arith.constant 0 : i32
    return %c0_i32, %c0_i32_0 : i32, i32
  }
  func.func @transform_3(%arg0: i32) -> (i32, i32) {
    %c0_i32 = arith.constant 0 : i32
    %c0_i32_0 = arith.constant 0 : i32
    %c0_i32_1 = arith.constant 0 : i32
    return %c0_i32, %c0_i32_0 : i32, i32
  }
  func.func @transform_4(%arg0: i32) -> (i32, i32) {
    %c0_i32 = arith.constant 0 : i32
    %c0_i32_0 = arith.constant 0 : i32
    %c0_i32_1 = arith.constant 0 : i32
    return %c0_i32, %c0_i32_0 : i32, i32
  }
  func.func @transform_5(%arg0: i32) -> (i32, i32) {
    %c0_i32 = arith.constant 0 : i32
    %c0_i32_0 = arith.constant 0 : i32
    %c0_i32_1 = arith.constant 0 : i32
    return %c0_i32, %c0_i32_0 : i32, i32
  }
  func.func @transform_6(%arg0: i32) -> (i32, i32) {
    %c0_i32 = arith.constant 0 : i32
    %c0_i32_0 = arith.constant 0 : i32
    %c0_i32_1 = arith.constant 0 : i32
    return %c0_i32, %c0_i32_0 : i32, i32
  }
  func.func @transform_7(%arg0: i32) -> (i32, i32) {
    %c0_i32 = arith.constant 0 : i32
    %c0_i32_0 = arith.constant 0 : i32
    %c0_i32_1 = arith.constant 0 : i32
    return %c0_i32, %c0_i32_0 : i32, i32
  }
  func.func @transform_8(%arg0: i32) -> (i32, i32) {
    %c0_i32 = arith.constant 0 : i32
    %c0_i32_0 = arith.constant 0 : i32
    %c0_i32_1 = arith.constant 0 : i32
    return %c0_i32, %c0_i32_0 : i32, i32
  }
  func.func @transform_9(%arg0: i32) -> (i32, i32) {
    %c0_i32 = arith.constant 0 : i32
    %c0_i32_0 = arith.constant 0 : i32
    %c0_i32_1 = arith.constant 0 : i32
    return %c0_i32, %c0_i32_0 : i32, i32
  }
  func.func @transform_10(%arg0: i32) -> (i32, i32) {
    %c0_i32 = arith.constant 0 : i32
    %c0_i32_0 = arith.constant 0 : i32
    %c0_i32_1 = arith.constant 0 : i32
    return %c0_i32, %c0_i32_0 : i32, i32
  }
  func.func @transform_11(%arg0: i32) -> (i32, i32) {
    %c0_i32 = arith.constant 0 : i32
    %c0_i32_0 = arith.constant 0 : i32
    %c0_i32_1 = arith.constant 0 : i32
    return %c0_i32, %c0_i32_0 : i32, i32
  }
  func.func @transform_12(%arg0: i32) -> (i32, i32) {
    %c0_i32 = arith.constant 0 : i32
    %c0_i32_0 = arith.constant 0 : i32
    %c0_i32_1 = arith.constant 0 : i32
    return %c0_i32, %c0_i32_0 : i32, i32
  }
  func.func @transform_13(%arg0: i32) -> (i32, i32) {
    %c0_i32 = arith.constant 0 : i32
    %c0_i32_0 = arith.constant 0 : i32
    %c0_i32_1 = arith.constant 0 : i32
    return %c0_i32, %c0_i32_0 : i32, i32
  }
  func.func @transform_14(%arg0: i32) -> (i32, i32) {
    %c0_i32 = arith.constant 0 : i32
    %c0_i32_0 = arith.constant 0 : i32
    return %arg0, %c0_i32 : i32, i32
  }
  func.func @transform_15(%arg0: i32) -> (i32, i32) {
    %c0_i32 = arith.constant 0 : i32
    %c0_i32_0 = arith.constant 0 : i32
    return %arg0, %c0_i32 : i32, i32
  }
  func.func @transform_16(%arg0: i32) -> (i32, i32) {
    %c0_i32 = arith.constant 0 : i32
    %c0_i32_0 = arith.constant 0 : i32
    return %arg0, %c0_i32 : i32, i32
  }
  func.func @transform_17(%arg0: i32) -> (i32, i32) {
    %c0_i32 = arith.constant 0 : i32
    %c0_i32_0 = arith.constant 0 : i32
    return %arg0, %c0_i32 : i32, i32
  }
  func.func @transform_18(%arg0: i32) -> (i32, i32) {
    %c0_i32 = arith.constant 0 : i32
    %c0_i32_0 = arith.constant 0 : i32
    return %arg0, %c0_i32 : i32, i32
  }
}

</mosaic_0001>

<llo_original>
// kernel: tpu_custom_call.1
$region0: #{tpu_custom_call.1}
  #allocation0 [shape = 'u32[]', space=smem, size = 0x4, offset = 0x4, fixed_abs, tag = 'smem constant byte address 0x4 - core index']
  #allocation1 [shape = 'u32[72,128]{1,0:T(1,128)}', space=vmem, size = 0x9000, scoped, tag = 'internal scratch']
  %s0 = inlined_call_operand.hbm [shape: f32[64,128], index: 0, kind: input, shape index: {}]
  %s1 = inlined_call_operand.hbm [shape: f32[64,128], index: 1, kind: input, shape index: {}]
  %s2 = inlined_call_operand.hbm [shape: f32[128,128], index: 2, kind: input, shape index: {}]
  %s3 = inlined_call_operand.vmem [shape: f32[1,128], index: 3, kind: input, shape index: {}]
  %s4 = inlined_call_operand.hbm [shape: f32[128,128], index: 4, kind: input, shape index: {}]
  %s5 = inlined_call_operand.vmem [shape: f32[1,128], index: 5, kind: input, shape index: {}]
  %s6 = inlined_call_operand.hbm [shape: f32[128,128], index: 6, kind: input, shape index: {}]
  %s7 = inlined_call_operand.vmem [shape: f32[1,128], index: 7, kind: input, shape index: {}]
  %s8 = inlined_call_operand.hbm [shape: f32[128,128], index: 8, kind: input, shape index: {}]
  %s9 = inlined_call_operand.vmem [shape: f32[1,128], index: 9, kind: input, shape index: {}]
  %s10 = inlined_call_operand.hbm [shape: f32[128,128], index: 10, kind: input, shape index: {}]
  %s11 = inlined_call_operand.vmem [shape: f32[1,128], index: 11, kind: input, shape index: {}]
  %s12 = inlined_call_operand.hbm [shape: f32[128,128], index: 12, kind: input, shape index: {}]
  %s13 = inlined_call_operand.vmem [shape: f32[1,128], index: 13, kind: input, shape index: {}]
  %s14 = inlined_call_operand.hbm [shape: f32[64,128], index: 14, kind: output, shape index: {0}]
  %s15 = inlined_call_operand.hbm [shape: f32[64,128], index: 15, kind: output, shape index: {1}]
  %s16 = inlined_call_operand.hbm [shape: f32[64,128], index: 16, kind: output, shape index: {2}]
  %s17 = inlined_call_operand.hbm [shape: f32[64,128], index: 17, kind: output, shape index: {3}]
  %s18 = inlined_call_operand.hbm [shape: f32[64,128], index: 18, kind: output, shape index: {4}]
  %19 = xla_tuple %s14, %s15, %s16, %s17, %s18
  %s20 = sld [smem:[#allocation0]]
  $region153: #{tpu_custom_call.1} parent=0
    _
  %s22 = ssub.s32 1, %s20
  %s23 = scalar_select 0, %s22, %s20
  $region1: #{tpu_custom_call.1} parent=0
    #allocation2 [shape = 'u8[16384]{0}', space=vmem, size = 0x4000, scoped, tag = 'input window, operand 0']
    #allocation3 [shape = 's32[2]{0}', space=sflag, size = 0x8, scoped, tag = 'scoped memory for tpu_custom_call.1']
    #allocation4 [shape = 's32[2]{0}', space=sflag, size = 0x8, scoped, tag = 'scoped memory for tpu_custom_call.1']
    #allocation5 [shape = 'u8[16384]{0}', space=vmem, size = 0x4000, scoped, tag = 'input window, operand 1']
    #allocation6 [shape = 's32[2]{0}', space=sflag, size = 0x8, scoped, tag = 'scoped memory for tpu_custom_call.1']
    #allocation7 [shape = 'u8[65536]{0}', space=vmem, size = 0x10000, scoped, tag = 'input window, operand 2, single buffered']
    #allocation8 [shape = 'u8[65536]{0}', space=vmem, size = 0x10000, scoped, tag = 'input window, operand 4, single buffered']
    #allocation9 [shape = 's32[1]{0}', space=sflag, size = 0x4, scoped, tag = 'scoped memory for tpu_custom_call.1']
    #allocation10 [shape = 'u8[65536]{0}', space=vmem, size = 0x10000, scoped, tag = 'input window, operand 6, single buffered']
    #allocation11 [shape = 'u8[65536]{0}', space=vmem, size = 0x10000, scoped, tag = 'input window, operand 8, single buffered']
    #allocation12 [shape = 's32[1]{0}', space=sflag, size = 0x4, scoped, tag = 'scoped memory for tpu_custom_call.1']
    #allocation13 [shape = 'u8[65536]{0}', space=vmem, size = 0x10000, scoped, tag = 'input window, operand 10, single buffered']
    #allocation14 [shape = 'u8[65536]{0}', space=vmem, size = 0x10000, scoped, tag = 'input window, operand 12, single buffered']
    #allocation15 [shape = 's32[1]{0}', space=sflag, size = 0x4, scoped, tag = 'scoped memory for tpu_custom_call.1']
    #allocation16 [shape = 'u8[16384]{0}', space=vmem, size = 0x4000, scoped, tag = 'output window, operand 0']
    #allocation17 [shape = 'u8[16384]{0}', space=vmem, size = 0x4000, scoped, tag = 'output window, operand 1']
    #allocation18 [shape = 's32[2]{0}', space=sflag, size = 0x8, scoped, tag = 'scoped memory for tpu_custom_call.1']
    #allocation19 [shape = 'u8[16384]{0}', space=vmem, size = 0x4000, scoped, tag = 'output window, operand 2']
    #allocation20 [shape = 'u8[16384]{0}', space=vmem, size = 0x4000, scoped, tag = 'output window, operand 3']
    #allocation21 [shape = 's32[2]{0}', space=sflag, size = 0x8, scoped, tag = 'scoped memory for tpu_custom_call.1']
    #allocation22 [shape = 'u8[16384]{0}', space=vmem, size = 0x4000, scoped, tag = 'output window, operand 4']
    %24 = vsyncpa [#allocation3], 0
    %s25 = scalar_lea.sflag [#allocation3], 1
    %26 = vsyncpa %s25, 0
    %27 = vsyncpa [#allocation6], 0
    %s28 = scalar_lea.sflag [#allocation6], 1
    %29 = vsyncpa %s28, 0
    %30 = vsyncpa [#allocation9], 0
    %31 = vsyncpa [#allocation12], 0
    %32 = vsyncpa [#allocation15], 0
    %33 = vsyncpa [#allocation4], 0
    %s34 = scalar_lea.sflag [#allocation4], 1
    %35 = vsyncpa %s34, 0
    %36 = vsyncpa [#allocation18], 0
    %s37 = scalar_lea.sflag [#allocation18], 1
    %38 = vsyncpa %s37, 0
    %39 = vsyncpa [#allocation21], 0
    %s40 = scalar_lea.sflag [#allocation21], 1
    %41 = vsyncpa %s40, 0
    loop: start=0, step=1, limit=6
    $region2: #{tpu_custom_call.1} parent=1 // loop_pre_header
      _
    $region3: #{tpu_custom_call.1} parent=1 // loop_header
      %s43 = sphi 0, %s47
      %p44 = scmp.ge.s32.totalorder %s43, 6
      %s53 = sphi 0, %s55
      %s56 = sphi 0, %s53
      %s57 = sphi 0, %s56
      %s73 = sphi 0, %s57
      %s79 = sphi 0, %s81
      %s82 = sphi 0, %s79
      %s83 = sphi 0, %s82
      %s99 = sphi 0, %s83
      %s103 = sphi 0, %s103
      %s105 = sphi 0, %s103
      %s106 = sphi 0, %s105
      %s120 = sphi 0, %s106
      %s124 = sphi 0, %s124
      %s126 = sphi 0, %s124
      %s127 = sphi 0, %s126
      %s141 = sphi 0, %s127
      %s145 = sphi 0, %s145
      %s147 = sphi 0, %s145
      %s148 = sphi 0, %s147
      %s162 = sphi 0, %s148
      %s166 = sphi 0, %s166
      %s168 = sphi 0, %s166
      %s169 = sphi 0, %s168
      %s183 = sphi 0, %s169
      %s187 = sphi 0, %s187
      %s189 = sphi 0, %s187
      %s190 = sphi 0, %s189
      %s204 = sphi 0, %s190
      %s208 = sphi 0, %s208
      %s210 = sphi 0, %s208
      %s211 = sphi 0, %s210
      %s225 = sphi 0, %s211
      %s229 = sphi 0, %s229
      %s231 = sphi 0, %s229
      %s232 = sphi 0, %s231
      %s246 = sphi 0, %s232
      %s250 = sphi 0, %s250
      %s252 = sphi 0, %s250
      %s253 = sphi 0, %s252
      %s267 = sphi 0, %s253
      %s271 = sphi 0, %s271
      %s273 = sphi 0, %s271
      %s274 = sphi 0, %s273
      %s288 = sphi 0, %s274
      %s292 = sphi 0, %s292
      %s294 = sphi 0, %s292
      %s295 = sphi 0, %s294
      %s309 = sphi 0, %s295
      %s313 = sphi 0, %s313
      %s315 = sphi 0, %s313
      %s316 = sphi 0, %s315
      %s330 = sphi 0, %s316
      %s334 = sphi 0, %s334
      %s336 = sphi 0, %s334
      %s337 = sphi 0, %s336
      %s351 = sphi 0, %s337
      %s357 = sphi 0, %s359
      %s360 = sphi 0, %s357
      %s361 = sphi 0, %s360
      %s377 = sphi 0, %s361
      %s383 = sphi 0, %s385
      %s386 = sphi 0, %s383
      %s387 = sphi 0, %s386
      %s403 = sphi 0, %s387
      %s409 = sphi 0, %s411
      %s412 = sphi 0, %s409
      %s413 = sphi 0, %s412
      %s429 = sphi 0, %s413
      %s435 = sphi 0, %s437
      %s438 = sphi 0, %s435
      %s439 = sphi 0, %s438
      %s455 = sphi 0, %s439
      %s461 = sphi 0, %s463
      %s464 = sphi 0, %s461
      %s465 = sphi 0, %s464
      %s481 = sphi 0, %s465
    $region4: #{tpu_custom_call.1} parent=1 // loop_header_branch
      %46 = sbr.rel (%p44) target = $region8
    $region5: #{tpu_custom_call.1} parent=1 // loop_body
      %s48 = ssub.s32 %s43, 1
      %s49 = ssub.s32 %s43, 2
      %s50 = sadd.s32 %s43, 1
      %s51 = ssub.s32 %s43, %s50
      %p52 = scmp.eq.s32.totalorder %s51, 0
      %s54 = sadd.s32 %s53, 1
      %s55 = scalar_select %p52, %s53, %s54
      %p58 = pneg %p52
      %p59 = scmp.eq.s32.totalorder %s43, 3
      %p60 = por %p58, %p59
      %p61 = scmp.ne.s32.totalorder %s53, %s56
      %p62 = scmp.eq.s32.totalorder %s43, 0
      %p63 = por %p61, %p62
      %p64 = scmp.ne.s32.totalorder %s53, %s56
      %p65 = scmp.eq.s32.totalorder %s48, 3
      %p66 = por %p64, %p65
      %p67 = scmp.ne.s32.totalorder %s56, %s57
      %p68 = scmp.eq.s32.totalorder %s48, 0
      %p69 = por %p67, %p68
      %p70 = scmp.ne.s32.totalorder %s56, %s57
      %p71 = scmp.eq.s32.totalorder %s49, 3
      %p72 = por %p70, %p71
      %p74 = scmp.ne.s32.totalorder %s57, %s73
      %p75 = scmp.eq.s32.totalorder %s49, 0
      %p76 = por %p74, %p75
      %s77 = ssub.s32 %s43, %s50
      %p78 = scmp.eq.s32.totalorder %s77, 0
      %s80 = sadd.s32 %s79, 1
      %s81 = scalar_select %p78, %s79, %s80
      %p84 = pneg %p78
      %p85 = scmp.eq.s32.totalorder %s43, 3
      %p86 = por %p84, %p85
      %p87 = scmp.ne.s32.totalorder %s79, %s82
      %p88 = scmp.eq.s32.totalorder %s43, 0
      %p89 = por %p87, %p88
      %p90 = scmp.ne.s32.totalorder %s79, %s82
      %p91 = scmp.eq.s32.totalorder %s48, 3
      %p92 = por %p90, %p91
      %p93 = scmp.ne.s32.totalorder %s82, %s83
      %p94 = scmp.eq.s32.totalorder %s48, 0
      %p95 = por %p93, %p94
      %p96 = scmp.ne.s32.totalorder %s82, %s83
      %p97 = scmp.eq.s32.totalorder %s49, 3
      %p98 = por %p96, %p97
      %p100 = scmp.ne.s32.totalorder %s83, %s99
      %p101 = scmp.eq.s32.totalorder %s49, 0
      %p102 = por %p100, %p101
      %s104 = sadd.s32 %s103, 1
      %p107 = scmp.eq.s32.totalorder %s43, 3
      %p108 = scmp.ne.s32.totalorder %s103, %s105
      %p109 = scmp.eq.s32.totalorder %s43, 0
      %p110 = por %p108, %p109
      %p111 = scmp.ne.s32.totalorder %s103, %s105
      %p112 = scmp.eq.s32.totalorder %s48, 3
      %p113 = por %p111, %p112
      %p114 = scmp.ne.s32.totalorder %s105, %s106
      %p115 = scmp.eq.s32.totalorder %s48, 0
      %p116 = por %p114, %p115
      %p117 = scmp.ne.s32.totalorder %s105, %s106
      %p118 = scmp.eq.s32.totalorder %s49, 3
      %p119 = por %p117, %p118
      %p121 = scmp.ne.s32.totalorder %s106, %s120
      %p122 = scmp.eq.s32.totalorder %s49, 0
      %p123 = por %p121, %p122
      %s125 = sadd.s32 %s124, 1
      %p128 = scmp.eq.s32.totalorder %s43, 3
      %p129 = scmp.ne.s32.totalorder %s124, %s126
      %p130 = scmp.eq.s32.totalorder %s43, 0
      %p131 = por %p129, %p130
      %p132 = scmp.ne.s32.totalorder %s124, %s126
      %p133 = scmp.eq.s32.totalorder %s48, 3
      %p134 = por %p132, %p133
      %p135 = scmp.ne.s32.totalorder %s126, %s127
      %p136 = scmp.eq.s32.totalorder %s48, 0
      %p137 = por %p135, %p136
      %p138 = scmp.ne.s32.totalorder %s126, %s127
      %p139 = scmp.eq.s32.totalorder %s49, 3
      %p140 = por %p138, %p139
      %p142 = scmp.ne.s32.totalorder %s127, %s141
      %p143 = scmp.eq.s32.totalorder %s49, 0
      %p144 = por %p142, %p143
      %s146 = sadd.s32 %s145, 1
      %p149 = scmp.eq.s32.totalorder %s43, 3
      %p150 = scmp.ne.s32.totalorder %s145, %s147
      %p151 = scmp.eq.s32.totalorder %s43, 0
      %p152 = por %p150, %p151
      %p153 = scmp.ne.s32.totalorder %s145, %s147
      %p154 = scmp.eq.s32.totalorder %s48, 3
      %p155 = por %p153, %p154
      %p156 = scmp.ne.s32.totalorder %s147, %s148
      %p157 = scmp.eq.s32.totalorder %s48, 0
      %p158 = por %p156, %p157
      %p159 = scmp.ne.s32.totalorder %s147, %s148
      %p160 = scmp.eq.s32.totalorder %s49, 3
      %p161 = por %p159, %p160
      %p163 = scmp.ne.s32.totalorder %s148, %s162
      %p164 = scmp.eq.s32.totalorder %s49, 0
      %p165 = por %p163, %p164
      %s167 = sadd.s32 %s166, 1
      %p170 = scmp.eq.s32.totalorder %s43, 3
      %p171 = scmp.ne.s32.totalorder %s166, %s168
      %p172 = scmp.eq.s32.totalorder %s43, 0
      %p173 = por %p171, %p172
      %p174 = scmp.ne.s32.totalorder %s166, %s168
      %p175 = scmp.eq.s32.totalorder %s48, 3
      %p176 = por %p174, %p175
      %p177 = scmp.ne.s32.totalorder %s168, %s169
      %p178 = scmp.eq.s32.totalorder %s48, 0
      %p179 = por %p177, %p178
      %p180 = scmp.ne.s32.totalorder %s168, %s169
      %p181 = scmp.eq.s32.totalorder %s49, 3
      %p182 = por %p180, %p181
      %p184 = scmp.ne.s32.totalorder %s169, %s183
      %p185 = scmp.eq.s32.totalorder %s49, 0
      %p186 = por %p184, %p185
      %s188 = sadd.s32 %s187, 1
      %p191 = scmp.eq.s32.totalorder %s43, 3
      %p192 = scmp.ne.s32.totalorder %s187, %s189
      %p193 = scmp.eq.s32.totalorder %s43, 0
      %p194 = por %p192, %p193
      %p195 = scmp.ne.s32.totalorder %s187, %s189
      %p196 = scmp.eq.s32.totalorder %s48, 3
      %p197 = por %p195, %p196
      %p198 = scmp.ne.s32.totalorder %s189, %s190
      %p199 = scmp.eq.s32.totalorder %s48, 0
      %p200 = por %p198, %p199
      %p201 = scmp.ne.s32.totalorder %s189, %s190
      %p202 = scmp.eq.s32.totalorder %s49, 3
      %p203 = por %p201, %p202
      %p205 = scmp.ne.s32.totalorder %s190, %s204
      %p206 = scmp.eq.s32.totalorder %s49, 0
      %p207 = por %p205, %p206
      %s209 = sadd.s32 %s208, 1
      %p212 = scmp.eq.s32.totalorder %s43, 3
      %p213 = scmp.ne.s32.totalorder %s208, %s210
      %p214 = scmp.eq.s32.totalorder %s43, 0
      %p215 = por %p213, %p214
      %p216 = scmp.ne.s32.totalorder %s208, %s210
      %p217 = scmp.eq.s32.totalorder %s48, 3
      %p218 = por %p216, %p217
      %p219 = scmp.ne.s32.totalorder %s210, %s211
      %p220 = scmp.eq.s32.totalorder %s48, 0
      %p221 = por %p219, %p220
      %p222 = scmp.ne.s32.totalorder %s210, %s211
      %p223 = scmp.eq.s32.totalorder %s49, 3
      %p224 = por %p222, %p223
      %p226 = scmp.ne.s32.totalorder %s211, %s225
      %p227 = scmp.eq.s32.totalorder %s49, 0
      %p228 = por %p226, %p227
      %s230 = sadd.s32 %s229, 1
      %p233 = scmp.eq.s32.totalorder %s43, 3
      %p234 = scmp.ne.s32.totalorder %s229, %s231
      %p235 = scmp.eq.s32.totalorder %s43, 0
      %p236 = por %p234, %p235
      %p237 = scmp.ne.s32.totalorder %s229, %s231
      %p238 = scmp.eq.s32.totalorder %s48, 3
      %p239 = por %p237, %p238
      %p240 = scmp.ne.s32.totalorder %s231, %s232
      %p241 = scmp.eq.s32.totalorder %s48, 0
      %p242 = por %p240, %p241
      %p243 = scmp.ne.s32.totalorder %s231, %s232
      %p244 = scmp.eq.s32.totalorder %s49, 3
      %p245 = por %p243, %p244
      %p247 = scmp.ne.s32.totalorder %s232, %s246
      %p248 = scmp.eq.s32.totalorder %s49, 0
      %p249 = por %p247, %p248
      %s251 = sadd.s32 %s250, 1
      %p254 = scmp.eq.s32.totalorder %s43, 3
      %p255 = scmp.ne.s32.totalorder %s250, %s252
      %p256 = scmp.eq.s32.totalorder %s43, 0
      %p257 = por %p255, %p256
      %p258 = scmp.ne.s32.totalorder %s250, %s252
      %p259 = scmp.eq.s32.totalorder %s48, 3
      %p260 = por %p258, %p259
      %p261 = scmp.ne.s32.totalorder %s252, %s253
      %p262 = scmp.eq.s32.totalorder %s48, 0
      %p263 = por %p261, %p262
      %p264 = scmp.ne.s32.totalorder %s252, %s253
      %p265 = scmp.eq.s32.totalorder %s49, 3
      %p266 = por %p264, %p265
      %p268 = scmp.ne.s32.totalorder %s253, %s267
      %p269 = scmp.eq.s32.totalorder %s49, 0
      %p270 = por %p268, %p269
      %s272 = sadd.s32 %s271, 1
      %p275 = scmp.eq.s32.totalorder %s43, 3
      %p276 = scmp.ne.s32.totalorder %s271, %s273
      %p277 = scmp.eq.s32.totalorder %s43, 0
      %p278 = por %p276, %p277
      %p279 = scmp.ne.s32.totalorder %s271, %s273
      %p280 = scmp.eq.s32.totalorder %s48, 3
      %p281 = por %p279, %p280
      %p282 = scmp.ne.s32.totalorder %s273, %s274
      %p283 = scmp.eq.s32.totalorder %s48, 0
      %p284 = por %p282, %p283
      %p285 = scmp.ne.s32.totalorder %s273, %s274
      %p286 = scmp.eq.s32.totalorder %s49, 3
      %p287 = por %p285, %p286
      %p289 = scmp.ne.s32.totalorder %s274, %s288
      %p290 = scmp.eq.s32.totalorder %s49, 0
      %p291 = por %p289, %p290
      %s293 = sadd.s32 %s292, 1
      %p296 = scmp.eq.s32.totalorder %s43, 3
      %p297 = scmp.ne.s32.totalorder %s292, %s294
      %p298 = scmp.eq.s32.totalorder %s43, 0
      %p299 = por %p297, %p298
      %p300 = scmp.ne.s32.totalorder %s292, %s294
      %p301 = scmp.eq.s32.totalorder %s48, 3
      %p302 = por %p300, %p301
      %p303 = scmp.ne.s32.totalorder %s294, %s295
      %p304 = scmp.eq.s32.totalorder %s48, 0
      %p305 = por %p303, %p304
      %p306 = scmp.ne.s32.totalorder %s294, %s295
      %p307 = scmp.eq.s32.totalorder %s49, 3
      %p308 = por %p306, %p307
      %p310 = scmp.ne.s32.totalorder %s295, %s309
      %p311 = scmp.eq.s32.totalorder %s49, 0
      %p312 = por %p310, %p311
      %s314 = sadd.s32 %s313, 1
      %p317 = scmp.eq.s32.totalorder %s43, 3
      %p318 = scmp.ne.s32.totalorder %s313, %s315
      %p319 = scmp.eq.s32.totalorder %s43, 0
      %p320 = por %p318, %p319
      %p321 = scmp.ne.s32.totalorder %s313, %s315
      %p322 = scmp.eq.s32.totalorder %s48, 3
      %p323 = por %p321, %p322
      %p324 = scmp.ne.s32.totalorder %s315, %s316
      %p325 = scmp.eq.s32.totalorder %s48, 0
      %p326 = por %p324, %p325
      %p327 = scmp.ne.s32.totalorder %s315, %s316
      %p328 = scmp.eq.s32.totalorder %s49, 3
      %p329 = por %p327, %p328
      %p331 = scmp.ne.s32.totalorder %s316, %s330
      %p332 = scmp.eq.s32.totalorder %s49, 0
      %p333 = por %p331, %p332
      %s335 = sadd.s32 %s334, 1
      %p338 = scmp.eq.s32.totalorder %s43, 3
      %p339 = scmp.ne.s32.totalorder %s334, %s336
      %p340 = scmp.eq.s32.totalorder %s43, 0
      %p341 = por %p339, %p340
      %p342 = scmp.ne.s32.totalorder %s334, %s336
      %p343 = scmp.eq.s32.totalorder %s48, 3
      %p344 = por %p342, %p343
      %p345 = scmp.ne.s32.totalorder %s336, %s337
      %p346 = scmp.eq.s32.totalorder %s48, 0
      %p347 = por %p345, %p346
      %p348 = scmp.ne.s32.totalorder %s336, %s337
      %p349 = scmp.eq.s32.totalorder %s49, 3
      %p350 = por %p348, %p349
      %p352 = scmp.ne.s32.totalorder %s337, %s351
      %p353 = scmp.eq.s32.totalorder %s49, 0
      %p354 = por %p352, %p353
      %s355 = ssub.s32 %s43, %s50
      %p356 = scmp.eq.s32.totalorder %s355, 0
      %s358 = sadd.s32 %s357, 1
      %s359 = scalar_select %p356, %s357, %s358
      %p362 = pneg %p356
      %p363 = scmp.eq.s32.totalorder %s43, 3
      %p364 = por %p362, %p363
      %p365 = scmp.ne.s32.totalorder %s357, %s360
      %p366 = scmp.eq.s32.totalorder %s43, 0
      %p367 = por %p365, %p366
      %p368 = scmp.ne.s32.totalorder %s357, %s360
      %p369 = scmp.eq.s32.totalorder %s48, 3
      %p370 = por %p368, %p369
      %p371 = scmp.ne.s32.totalorder %s360, %s361
      %p372 = scmp.eq.s32.totalorder %s48, 0
      %p373 = por %p371, %p372
      %p374 = scmp.ne.s32.totalorder %s360, %s361
      %p375 = scmp.eq.s32.totalorder %s49, 3
      %p376 = por %p374, %p375
      %p378 = scmp.ne.s32.totalorder %s361, %s377
      %p379 = scmp.eq.s32.totalorder %s49, 0
      %p380 = por %p378, %p379
      %s381 = ssub.s32 %s43, %s50
      %p382 = scmp.eq.s32.totalorder %s381, 0
      %s384 = sadd.s32 %s383, 1
      %s385 = scalar_select %p382, %s383, %s384
      %p388 = pneg %p382
      %p389 = scmp.eq.s32.totalorder %s43, 3
      %p390 = por %p388, %p389
      %p391 = scmp.ne.s32.totalorder %s383, %s386
      %p392 = scmp.eq.s32.totalorder %s43, 0
      %p393 = por %p391, %p392
      %p394 = scmp.ne.s32.totalorder %s383, %s386
      %p395 = scmp.eq.s32.totalorder %s48, 3
      %p396 = por %p394, %p395
      %p397 = scmp.ne.s32.totalorder %s386, %s387
      %p398 = scmp.eq.s32.totalorder %s48, 0
      %p399 = por %p397, %p398
      %p400 = scmp.ne.s32.totalorder %s386, %s387
      %p401 = scmp.eq.s32.totalorder %s49, 3
      %p402 = por %p400, %p401
      %p404 = scmp.ne.s32.totalorder %s387, %s403
      %p405 = scmp.eq.s32.totalorder %s49, 0
      %p406 = por %p404, %p405
      %s407 = ssub.s32 %s43, %s50
      %p408 = scmp.eq.s32.totalorder %s407, 0
      %s410 = sadd.s32 %s409, 1
      %s411 = scalar_select %p408, %s409, %s410
      %p414 = pneg %p408
      %p415 = scmp.eq.s32.totalorder %s43, 3
      %p416 = por %p414, %p415
      %p417 = scmp.ne.s32.totalorder %s409, %s412
      %p418 = scmp.eq.s32.totalorder %s43, 0
      %p419 = por %p417, %p418
      %p420 = scmp.ne.s32.totalorder %s409, %s412
      %p421 = scmp.eq.s32.totalorder %s48, 3
      %p422 = por %p420, %p421
      %p423 = scmp.ne.s32.totalorder %s412, %s413
      %p424 = scmp.eq.s32.totalorder %s48, 0
      %p425 = por %p423, %p424
      %p426 = scmp.ne.s32.totalorder %s412, %s413
      %p427 = scmp.eq.s32.totalorder %s49, 3
      %p428 = por %p426, %p427
      %p430 = scmp.ne.s32.totalorder %s413, %s429
      %p431 = scmp.eq.s32.totalorder %s49, 0
      %p432 = por %p430, %p431
      %s433 = ssub.s32 %s43, %s50
      %p434 = scmp.eq.s32.totalorder %s433, 0
      %s436 = sadd.s32 %s435, 1
      %s437 = scalar_select %p434, %s435, %s436
      %p440 = pneg %p434
      %p441 = scmp.eq.s32.totalorder %s43, 3
      %p442 = por %p440, %p441
      %p443 = scmp.ne.s32.totalorder %s435, %s438
      %p444 = scmp.eq.s32.totalorder %s43, 0
      %p445 = por %p443, %p444
      %p446 = scmp.ne.s32.totalorder %s435, %s438
      %p447 = scmp.eq.s32.totalorder %s48, 3
      %p448 = por %p446, %p447
      %p449 = scmp.ne.s32.totalorder %s438, %s439
      %p450 = scmp.eq.s32.totalorder %s48, 0
      %p451 = por %p449, %p450
      %p452 = scmp.ne.s32.totalorder %s438, %s439
      %p453 = scmp.eq.s32.totalorder %s49, 3
      %p454 = por %p452, %p453
      %p456 = scmp.ne.s32.totalorder %s439, %s455
      %p457 = scmp.eq.s32.totalorder %s49, 0
      %p458 = por %p456, %p457
      %s459 = ssub.s32 %s43, %s50
      %p460 = scmp.eq.s32.totalorder %s459, 0
      %s462 = sadd.s32 %s461, 1
      %s463 = scalar_select %p460, %s461, %s462
      %p466 = pneg %p460
      %p467 = scmp.eq.s32.totalorder %s43, 3
      %p468 = por %p466, %p467
      %p469 = scmp.ne.s32.totalorder %s461, %s464
      %p470 = scmp.eq.s32.totalorder %s43, 0
      %p471 = por %p469, %p470
      %p472 = scmp.ne.s32.totalorder %s461, %s464
      %p473 = scmp.eq.s32.totalorder %s48, 3
      %p474 = por %p472, %p473
      %p475 = scmp.ne.s32.totalorder %s464, %s465
      %p476 = scmp.eq.s32.totalorder %s48, 0
      %p477 = por %p475, %p476
      %p478 = scmp.ne.s32.totalorder %s464, %s465
      %p479 = scmp.eq.s32.totalorder %s49, 3
      %p480 = por %p478, %p479
      %p482 = scmp.ne.s32.totalorder %s465, %s481
      %p483 = scmp.eq.s32.totalorder %s49, 0
      %p484 = por %p482, %p483
      %p485 = scmp.le.s32.totalorder 1, %s43
      %p486 = scmp.lt.s32.totalorder %s43, 5
      %p487 = pnand %p485, %p486
      %p488 = pneg %p487
      // Predicated region
      $region9: #{tpu_custom_call.1} parent=5 // pred_check
        _
      $region10: #{tpu_custom_call.1} parent=5 // pred_check_branch
        %490 = sbr.rel (%p487) target = $region12
      $region11: #{tpu_custom_call.1} parent=5 // pred_region
        %s491 = ssub.s32 %s43, 1
        // Predicated region
        $region13: #{tpu_custom_call.1} parent=11 // pred_check
          %p492 = pneg %p116
        $region14: #{tpu_custom_call.1} parent=11 // pred_check_branch
          %494 = sbr.rel (%p492) target = $region16
        $region15: #{tpu_custom_call.1} parent=11 // pred_region
          %496 = vsyncadd [#allocation6], 0
          %s497 = sshll.u32 %s2, 4
          %s498 = int_to_ptr.hbm [resolvable:$true] %s497
          %s499 = sshll.u32 [#allocation7], 4
          %s500 = int_to_ptr.vmem [resolvable:$true] %s499
          %505 = dma.hbm_to_vmem [thread:$0]  %s498, 2048, %s500, [#allocation6], 128, 128, 8
        $region16: #{tpu_custom_call.1} parent=11 // pred_fallthru
          _
        // Predicated region
        $region17: #{tpu_custom_call.1} parent=11 // pred_check
          %p506 = pneg %p137
        $region18: #{tpu_custom_call.1} parent=11 // pred_check_branch
          %508 = sbr.rel (%p506) target = $region20
        $region19: #{tpu_custom_call.1} parent=11 // pred_region
          _
        $region20: #{tpu_custom_call.1} parent=11 // pred_fallthru
          _
        // Predicated region
        $region21: #{tpu_custom_call.1} parent=11 // pred_check
          %p509 = pneg %p158
        $region22: #{tpu_custom_call.1} parent=11 // pred_check_branch
          %511 = sbr.rel (%p509) target = $region24
        $region23: #{tpu_custom_call.1} parent=11 // pred_region
          %513 = vsyncadd [#allocation9], 0
          %s514 = sshll.u32 %s4, 4
          %s515 = int_to_ptr.hbm [resolvable:$true] %s514
          %s516 = sshll.u32 [#allocation8], 4
          %s517 = int_to_ptr.vmem [resolvable:$true] %s516
          %522 = dma.hbm_to_vmem [thread:$0]  %s515, 2048, %s517, [#allocation9], 128, 128, 8
        $region24: #{tpu_custom_call.1} parent=11 // pred_fallthru
          _
        // Predicated region
        $region25: #{tpu_custom_call.1} parent=11 // pred_check
          %p523 = pneg %p179
        $region26: #{tpu_custom_call.1} parent=11 // pred_check_branch
          %525 = sbr.rel (%p523) target = $region28
        $region27: #{tpu_custom_call.1} parent=11 // pred_region
          _
        $region28: #{tpu_custom_call.1} parent=11 // pred_fallthru
          _
        // Predicated region
        $region29: #{tpu_custom_call.1} parent=11 // pred_check
          %p526 = pneg %p200
        $region30: #{tpu_custom_call.1} parent=11 // pred_check_branch
          %528 = sbr.rel (%p526) target = $region32
        $region31: #{tpu_custom_call.1} parent=11 // pred_region
          %530 = vsyncadd [#allocation9], 0
          %s531 = sshll.u32 %s6, 4
          %s532 = int_to_ptr.hbm [resolvable:$true] %s531
          %s533 = sshll.u32 [#allocation10], 4
          %s534 = int_to_ptr.vmem [resolvable:$true] %s533
          %539 = dma.hbm_to_vmem [thread:$0]  %s532, 2048, %s534, [#allocation9], 128, 128, 8
        $region32: #{tpu_custom_call.1} parent=11 // pred_fallthru
          _
        // Predicated region
        $region33: #{tpu_custom_call.1} parent=11 // pred_check
          %p540 = pneg %p221
        $region34: #{tpu_custom_call.1} parent=11 // pred_check_branch
          %542 = sbr.rel (%p540) target = $region36
        $region35: #{tpu_custom_call.1} parent=11 // pred_region
          _
        $region36: #{tpu_custom_call.1} parent=11 // pred_fallthru
          _
        // Predicated region
        $region37: #{tpu_custom_call.1} parent=11 // pred_check
          %p543 = pneg %p242
        $region38: #{tpu_custom_call.1} parent=11 // pred_check_branch
          %545 = sbr.rel (%p543) target = $region40
        $region39: #{tpu_custom_call.1} parent=11 // pred_region
          %547 = vsyncadd [#allocation12], 0
          %s548 = sshll.u32 %s8, 4
          %s549 = int_to_ptr.hbm [resolvable:$true] %s548
          %s550 = sshll.u32 [#allocation11], 4
          %s551 = int_to_ptr.vmem [resolvable:$true] %s550
          %556 = dma.hbm_to_vmem [thread:$0]  %s549, 2048, %s551, [#allocation12], 128, 128, 8
        $region40: #{tpu_custom_call.1} parent=11 // pred_fallthru
          _
        // Predicated region
        $region41: #{tpu_custom_call.1} parent=11 // pred_check
          %p557 = pneg %p263
        $region42: #{tpu_custom_call.1} parent=11 // pred_check_branch
          %559 = sbr.rel (%p557) target = $region44
        $region43: #{tpu_custom_call.1} parent=11 // pred_region
          _
        $region44: #{tpu_custom_call.1} parent=11 // pred_fallthru
          _
        // Predicated region
        $region45: #{tpu_custom_call.1} parent=11 // pred_check
          %p560 = pneg %p284
        $region46: #{tpu_custom_call.1} parent=11 // pred_check_branch
          %562 = sbr.rel (%p560) target = $region48
        $region47: #{tpu_custom_call.1} parent=11 // pred_region
          %564 = vsyncadd [#allocation12], 0
          %s565 = sshll.u32 %s10, 4
          %s566 = int_to_ptr.hbm [resolvable:$true] %s565
          %s567 = sshll.u32 [#allocation13], 4
          %s568 = int_to_ptr.vmem [resolvable:$true] %s567
          %573 = dma.hbm_to_vmem [thread:$0]  %s566, 2048, %s568, [#allocation12], 128, 128, 8
        $region48: #{tpu_custom_call.1} parent=11 // pred_fallthru
          _
        // Predicated region
        $region49: #{tpu_custom_call.1} parent=11 // pred_check
          %p574 = pneg %p305
        $region50: #{tpu_custom_call.1} parent=11 // pred_check_branch
          %576 = sbr.rel (%p574) target = $region52
        $region51: #{tpu_custom_call.1} parent=11 // pred_region
          _
        $region52: #{tpu_custom_call.1} parent=11 // pred_fallthru
          _
        // Predicated region
        $region53: #{tpu_custom_call.1} parent=11 // pred_check
          %p577 = pneg %p326
        $region54: #{tpu_custom_call.1} parent=11 // pred_check_branch
          %579 = sbr.rel (%p577) target = $region56
        $region55: #{tpu_custom_call.1} parent=11 // pred_region
          %581 = vsyncadd [#allocation15], 0
          %s582 = sshll.u32 %s12, 4
          %s583 = int_to_ptr.hbm [resolvable:$true] %s582
          %s584 = sshll.u32 [#allocation14], 4
          %s585 = int_to_ptr.vmem [resolvable:$true] %s584
          %590 = dma.hbm_to_vmem [thread:$0]  %s583, 2048, %s585, [#allocation15], 128, 128, 8
        $region56: #{tpu_custom_call.1} parent=11 // pred_fallthru
          _
        // Predicated region
        $region57: #{tpu_custom_call.1} parent=11 // pred_check
          %p591 = pneg %p347
        $region58: #{tpu_custom_call.1} parent=11 // pred_check_branch
          %593 = sbr.rel (%p591) target = $region60
        $region59: #{tpu_custom_call.1} parent=11 // pred_region
          _
        $region60: #{tpu_custom_call.1} parent=11 // pred_fallthru
          _
      $region12: #{tpu_custom_call.1} parent=5 // pred_fallthru
        _
      %p594 = scmp.lt.s32.totalorder %s43, 4
      // Predicated region
      $region61: #{tpu_custom_call.1} parent=5 // pred_check
        %p595 = pneg %p594
      $region62: #{tpu_custom_call.1} parent=5 // pred_check_branch
        %597 = sbr.rel (%p595) target = $region64
      $region63: #{tpu_custom_call.1} parent=5 // pred_region
        // Predicated region
        $region65: #{tpu_custom_call.1} parent=63 // pred_check
          %p598 = pneg %p63
        $region66: #{tpu_custom_call.1} parent=63 // pred_check_branch
          %600 = sbr.rel (%p598) target = $region68
        $region67: #{tpu_custom_call.1} parent=63 // pred_region
          %s601 = sand.u32 %s53, 1
          %s602 = scalar_lea.sflag [#allocation3], %s601
          %s603 = sand.u32 %s53, 1
          %s604 = smul.addr %s603, 16
          %s605 = scalar_lea.vmem [#allocation2], %s604
          %s606 = smul.u32 2, %s43
          %608 = vsyncadd %s602, 0
          %s609 = smul.addr %s606, 8
          %s610 = scalar_lea.hbm %s0, %s609
          %s611 = sshll.u32 %s610, 4
          %s612 = int_to_ptr.hbm [resolvable:$true] %s611
          %s613 = sshll.u32 %s605, 4
          %s614 = int_to_ptr.vmem [resolvable:$true] %s613
          %619 = dma.hbm_to_vmem [thread:$0]  %s612, 256, %s614, %s602, 128, 128, 8
        $region68: #{tpu_custom_call.1} parent=63 // pred_fallthru
          _
        // Predicated region
        $region69: #{tpu_custom_call.1} parent=63 // pred_check
          %p620 = pneg %p89
        $region70: #{tpu_custom_call.1} parent=63 // pred_check_branch
          %622 = sbr.rel (%p620) target = $region72
        $region71: #{tpu_custom_call.1} parent=63 // pred_region
          %s623 = sand.u32 %s43, 1
          %s624 = scalar_lea.sflag [#allocation6], %s623
          %s625 = sand.u32 %s79, 1
          %s626 = smul.addr %s625, 16
          %s627 = scalar_lea.vmem [#allocation5], %s626
          %s628 = smul.u32 2, %s43
          %630 = vsyncadd %s624, 0
          %s631 = smul.addr %s628, 8
          %s632 = scalar_lea.hbm %s1, %s631
          %s633 = sshll.u32 %s632, 4
          %s634 = int_to_ptr.hbm [resolvable:$true] %s633
          %s635 = sshll.u32 %s627, 4
          %s636 = int_to_ptr.vmem [resolvable:$true] %s635
          %641 = dma.hbm_to_vmem [thread:$0]  %s634, 256, %s636, %s624, 128, 128, 8
        $region72: #{tpu_custom_call.1} parent=63 // pred_fallthru
          _
      $region64: #{tpu_custom_call.1} parent=5 // pred_fallthru
        _
      %p642 = scmp.le.s32.totalorder 1, %s43
      %p643 = scmp.lt.s32.totalorder %s43, 5
      %p644 = pnand %p642, %p643
      %p645 = pneg %p644
      // Predicated region
      $region73: #{tpu_custom_call.1} parent=5 // pred_check
        _
      $region74: #{tpu_custom_call.1} parent=5 // pred_check_branch
        %647 = sbr.rel (%p644) target = $region76
      $region75: #{tpu_custom_call.1} parent=5 // pred_region
        %s648 = ssub.s32 %s43, 1
        %s649 = sand.u32 %s56, 1
        %s650 = scalar_lea.sflag [#allocation3], %s649
        %s651 = sand.u32 %s56, 1
        %s652 = smul.addr %s651, 16
        %s653 = scalar_lea.vmem [#allocation2], %s652
        // Predicated region
        $region77: #{tpu_custom_call.1} parent=75 // pred_check
          %p654 = pneg %p69
        $region78: #{tpu_custom_call.1} parent=75 // pred_check_branch
          %656 = sbr.rel (%p654) target = $region80
        $region79: #{tpu_custom_call.1} parent=75 // pred_region
          %658 = dma.done %s650, 256
        $region80: #{tpu_custom_call.1} parent=75 // pred_fallthru
          _
        %s659 = sand.u32 %s48, 1
        %s660 = scalar_lea.sflag [#allocation6], %s659
        %s661 = sand.u32 %s82, 1
        %s662 = smul.addr %s661, 16
        %s663 = scalar_lea.vmem [#allocation5], %s662
        // Predicated region
        $region81: #{tpu_custom_call.1} parent=75 // pred_check
          %p664 = pneg %p95
        $region82: #{tpu_custom_call.1} parent=75 // pred_check_branch
          %666 = sbr.rel (%p664) target = $region84
        $region83: #{tpu_custom_call.1} parent=75 // pred_region
          %668 = dma.done %s660, 256
        $region84: #{tpu_custom_call.1} parent=75 // pred_fallthru
          _
        // Predicated region
        $region85: #{tpu_custom_call.1} parent=75 // pred_check
          %p669 = pneg %p116
        $region86: #{tpu_custom_call.1} parent=75 // pred_check_branch
          %671 = sbr.rel (%p669) target = $region88
        $region87: #{tpu_custom_call.1} parent=75 // pred_region
          %673 = dma.done [#allocation6], 2048
        $region88: #{tpu_custom_call.1} parent=75 // pred_fallthru
          _
        // Predicated region
        $region89: #{tpu_custom_call.1} parent=75 // pred_check
          %p674 = pneg %p158
        $region90: #{tpu_custom_call.1} parent=75 // pred_check_branch
          %676 = sbr.rel (%p674) target = $region92
        $region91: #{tpu_custom_call.1} parent=75 // pred_region
          %678 = dma.done [#allocation9], 2048
        $region92: #{tpu_custom_call.1} parent=75 // pred_fallthru
          _
        // Predicated region
        $region93: #{tpu_custom_call.1} parent=75 // pred_check
          %p679 = pneg %p200
        $region94: #{tpu_custom_call.1} parent=75 // pred_check_branch
          %681 = sbr.rel (%p679) target = $region96
        $region95: #{tpu_custom_call.1} parent=75 // pred_region
          %683 = dma.done [#allocation9], 2048
        $region96: #{tpu_custom_call.1} parent=75 // pred_fallthru
          _
        // Predicated region
        $region97: #{tpu_custom_call.1} parent=75 // pred_check
          %p684 = pneg %p242
        $region98: #{tpu_custom_call.1} parent=75 // pred_check_branch
          %686 = sbr.rel (%p684) target = $region100
        $region99: #{tpu_custom_call.1} parent=75 // pred_region
          %688 = dma.done [#allocation12], 2048
        $region100: #{tpu_custom_call.1} parent=75 // pred_fallthru
          _
        // Predicated region
        $region101: #{tpu_custom_call.1} parent=75 // pred_check
          %p689 = pneg %p284
        $region102: #{tpu_custom_call.1} parent=75 // pred_check_branch
          %691 = sbr.rel (%p689) target = $region104
        $region103: #{tpu_custom_call.1} parent=75 // pred_region
          %693 = dma.done [#allocation12], 2048
        $region104: #{tpu_custom_call.1} parent=75 // pred_fallthru
          _
        // Predicated region
        $region105: #{tpu_custom_call.1} parent=75 // pred_check
          %p694 = pneg %p326
        $region106: #{tpu_custom_call.1} parent=75 // pred_check_branch
          %696 = sbr.rel (%p694) target = $region108
        $region107: #{tpu_custom_call.1} parent=75 // pred_region
          %698 = dma.done [#allocation15], 2048
        $region108: #{tpu_custom_call.1} parent=75 // pred_fallthru
          _
        %s699 = sand.u32 %s56, 1
        %s700 = scalar_lea.sflag [#allocation3], %s699
        %s701 = sand.u32 %s56, 1
        %s702 = smul.addr %s701, 16
        %s703 = scalar_lea.vmem [#allocation2], %s702
        %p704 = pneg %p69
        %p705 = pneg %p66
        %s706 = sand.u32 %s48, 1
        %s707 = scalar_lea.sflag [#allocation6], %s706
        %s708 = sand.u32 %s82, 1
        %s709 = smul.addr %s708, 16
        %s710 = scalar_lea.vmem [#allocation5], %s709
        %p711 = pneg %p95
        %p712 = pneg %p92
        %p713 = pneg %p116
        %p714 = pneg %p113
        %p715 = pneg %p137
        %p716 = pneg %p134
        %p717 = pneg %p158
        %p718 = pneg %p155
        %p719 = pneg %p179
        %p720 = pneg %p176
        %p721 = pneg %p200
        %p722 = pneg %p197
        %p723 = pneg %p221
        %p724 = pneg %p218
        %p725 = pneg %p242
        %p726 = pneg %p239
        %p727 = pneg %p263
        %p728 = pneg %p260
        %p729 = pneg %p284
        %p730 = pneg %p281
        %p731 = pneg %p305
        %p732 = pneg %p302
        %p733 = pneg %p326
        %p734 = pneg %p323
        %p735 = pneg %p347
        %p736 = pneg %p344
        %p737 = pneg %p373
        %p738 = pneg %p370
        %s739 = sand.u32 %s360, 1
        %s740 = scalar_lea.sflag [#allocation4], %s739
        %s741 = sand.u32 %s360, 1
        %s742 = smul.addr %s741, 16
        %s743 = scalar_lea.vmem [#allocation16], %s742
        %p744 = pneg %p399
        %p745 = pneg %p396
        %s746 = sand.u32 %s48, 1
        %s747 = scalar_lea.sflag [#allocation18], %s746
        %s748 = sand.u32 %s386, 1
        %s749 = smul.addr %s748, 16
        %s750 = scalar_lea.vmem [#allocation17], %s749
        %p751 = pneg %p425
        %p752 = pneg %p422
        %s753 = sand.u32 %s48, 1
        %s754 = scalar_lea.sflag [#allocation18], %s753
        %s755 = sand.u32 %s412, 1
        %s756 = smul.addr %s755, 16
        %s757 = scalar_lea.vmem [#allocation19], %s756
        %p758 = pneg %p451
        %p759 = pneg %p448
        %s760 = sand.u32 %s48, 1
        %s761 = scalar_lea.sflag [#allocation21], %s760
        %s762 = sand.u32 %s438, 1
        %s763 = smul.addr %s762, 16
        %s764 = scalar_lea.vmem [#allocation20], %s763
        %p765 = pneg %p477
        %p766 = pneg %p474
        %s767 = sand.u32 %s48, 1
        %s768 = scalar_lea.sflag [#allocation21], %s767
        %s769 = sand.u32 %s464, 1
        %s770 = smul.addr %s769, 16
        %s771 = scalar_lea.vmem [#allocation22], %s770
        %s772 = smul.u32 2, %s48
        %s773 = smul.u32 2, %s48
        %s774 = smul.u32 2, %s48
        %s775 = smul.u32 2, %s48
        %s776 = smul.u32 2, %s48
        %s777 = smul.u32 2, %s48
        %s778 = smul.u32 2, %s48
        %v779 = vld [vmem:[%s653] sm:$0xff]
        %v780 = vld [vmem:[%s653 + $0x8] sm:$0xff]
        %v781 = vld [vmem:[#allocation7] sm:$0xff]
        %v782 = vld [vmem:[#allocation7 + $0x8] sm:$0xff]
        %v783 = vld [vmem:[#allocation7 + $0x10] sm:$0xff]
        %v784 = vld [vmem:[#allocation7 + $0x18] sm:$0xff]
        %v785 = vld [vmem:[#allocation7 + $0x20] sm:$0xff]
        %v786 = vld [vmem:[#allocation7 + $0x28] sm:$0xff]
        %v787 = vld [vmem:[#allocation7 + $0x30] sm:$0xff]
        %v788 = vld [vmem:[#allocation7 + $0x38] sm:$0xff]
        %v789 = vld [vmem:[#allocation7 + $0x40] sm:$0xff]
        %v790 = vld [vmem:[#allocation7 + $0x48] sm:$0xff]
        %v791 = vld [vmem:[#allocation7 + $0x50] sm:$0xff]
        %v792 = vld [vmem:[#allocation7 + $0x58] sm:$0xff]
        %v793 = vld [vmem:[#allocation7 + $0x60] sm:$0xff]
        %v794 = vld [vmem:[#allocation7 + $0x68] sm:$0xff]
        %v795 = vld [vmem:[#allocation7 + $0x70] sm:$0xff]
        %v796 = vld [vmem:[#allocation7 + $0x78] sm:$0xff]
        %v797 = vld [vmem:[%s3] sm:$0x1]
        %v799 = vperm.slane %v797, 0
        %801 = vmatpush.msra.mxu0 %v796
        %802 = vmatpush.msra.mxu0 %v795
        %803 = vmatpush.msra.mxu0 %v794
        %804 = vmatpush.msra.mxu0 %v793
        %805 = vmatpush.msra.mxu0 %v792
        %806 = vmatpush.msra.mxu0 %v791
        %807 = vmatpush.msra.mxu0 %v790
        %808 = vmatpush.msra.mxu0 %v789
        %809 = vmatpush.msra.mxu0 %v788
        %810 = vmatpush.msra.mxu0 %v787
        %811 = vmatpush.msra.mxu0 %v786
        %812 = vmatpush.msra.mxu0 %v785
        %813 = vmatpush.msra.mxu0 %v784
        %814 = vmatpush.msra.mxu0 %v783
        %815 = vmatpush.msra.mxu0 %v782
        %816 = vmatpush.msra.mxu0 %v781
        %817 = vmatmul.f32.gmra.mxu0 %v779
        %v818 = vpop.f32.mrf.mxu0
        %v819 = vadd.f32 %v799, %v818
        %820 = vmatmul.f32.gmra.mxu0 %v780
        %v821 = vpop.f32.mrf.mxu0
        %v822 = vadd.f32 %v799, %v821
        %823 = vdwg.mxu0
        %v824 = vtanh.pop %v819
        %v825 = vtanh.pop %v822
        %v826 = vld [vmem:[#allocation8] sm:$0xff]
        %v827 = vld [vmem:[#allocation8 + $0x8] sm:$0xff]
        %v828 = vld [vmem:[#allocation8 + $0x10] sm:$0xff]
        %v829 = vld [vmem:[#allocation8 + $0x18] sm:$0xff]
        %v830 = vld [vmem:[#allocation8 + $0x20] sm:$0xff]
        %v831 = vld [vmem:[#allocation8 + $0x28] sm:$0xff]
        %v832 = vld [vmem:[#allocation8 + $0x30] sm:$0xff]
        %v833 = vld [vmem:[#allocation8 + $0x38] sm:$0xff]
        %v834 = vld [vmem:[#allocation8 + $0x40] sm:$0xff]
        %v835 = vld [vmem:[#allocation8 + $0x48] sm:$0xff]
        %v836 = vld [vmem:[#allocation8 + $0x50] sm:$0xff]
        %v837 = vld [vmem:[#allocation8 + $0x58] sm:$0xff]
        %v838 = vld [vmem:[#allocation8 + $0x60] sm:$0xff]
        %v839 = vld [vmem:[#allocation8 + $0x68] sm:$0xff]
        %v840 = vld [vmem:[#allocation8 + $0x70] sm:$0xff]
        %v841 = vld [vmem:[#allocation8 + $0x78] sm:$0xff]
        %v842 = vld [vmem:[%s5] sm:$0x1]
        %v844 = vperm.slane %v842, 0
        %846 = vmatpush.msra.mxu0 %v841
        %847 = vmatpush.msra.mxu0 %v840
        %848 = vmatpush.msra.mxu0 %v839
        %849 = vmatpush.msra.mxu0 %v838
        %850 = vmatpush.msra.mxu0 %v837
        %851 = vmatpush.msra.mxu0 %v836
        %852 = vmatpush.msra.mxu0 %v835
        %853 = vmatpush.msra.mxu0 %v834
        %854 = vmatpush.msra.mxu0 %v833
        %855 = vmatpush.msra.mxu0 %v832
        %856 = vmatpush.msra.mxu0 %v831
        %857 = vmatpush.msra.mxu0 %v830
        %858 = vmatpush.msra.mxu0 %v829
        %859 = vmatpush.msra.mxu0 %v828
        %860 = vmatpush.msra.mxu0 %v827
        %861 = vmatpush.msra.mxu0 %v826
        %862 = vmatmul.f32.gmra.mxu0 %v824
        %v863 = vpop.f32.mrf.mxu0
        %v864 = vadd.f32 %v844, %v863
        %865 = vmatmul.f32.gmra.mxu0 %v825
        %v866 = vpop.f32.mrf.mxu0
        %v867 = vadd.f32 %v844, %v866
        %868 = vdwg.mxu0
        %v869 = vld [vmem:[#allocation10] sm:$0xff]
        %v870 = vld [vmem:[#allocation10 + $0x8] sm:$0xff]
        %v871 = vld [vmem:[#allocation10 + $0x10] sm:$0xff]
        %v872 = vld [vmem:[#allocation10 + $0x18] sm:$0xff]
        %v873 = vld [vmem:[#allocation10 + $0x20] sm:$0xff]
        %v874 = vld [vmem:[#allocation10 + $0x28] sm:$0xff]
        %v875 = vld [vmem:[#allocation10 + $0x30] sm:$0xff]
        %v876 = vld [vmem:[#allocation10 + $0x38] sm:$0xff]
        %v877 = vld [vmem:[#allocation10 + $0x40] sm:$0xff]
        %v878 = vld [vmem:[#allocation10 + $0x48] sm:$0xff]
        %v879 = vld [vmem:[#allocation10 + $0x50] sm:$0xff]
        %v880 = vld [vmem:[#allocation10 + $0x58] sm:$0xff]
        %v881 = vld [vmem:[#allocation10 + $0x60] sm:$0xff]
        %v882 = vld [vmem:[#allocation10 + $0x68] sm:$0xff]
        %v883 = vld [vmem:[#allocation10 + $0x70] sm:$0xff]
        %v884 = vld [vmem:[#allocation10 + $0x78] sm:$0xff]
        %v885 = vld [vmem:[%s7] sm:$0x1]
        %v887 = vperm.slane %v885, 0
        %889 = vmatpush.msra.mxu0 %v884
        %890 = vmatpush.msra.mxu0 %v883
        %891 = vmatpush.msra.mxu0 %v882
        %892 = vmatpush.msra.mxu0 %v881
        %893 = vmatpush.msra.mxu0 %v880
        %894 = vmatpush.msra.mxu0 %v879
        %895 = vmatpush.msra.mxu0 %v878
        %896 = vmatpush.msra.mxu0 %v877
        %897 = vmatpush.msra.mxu0 %v876
        %898 = vmatpush.msra.mxu0 %v875
        %899 = vmatpush.msra.mxu0 %v874
        %900 = vmatpush.msra.mxu0 %v873
        %901 = vmatpush.msra.mxu0 %v872
        %902 = vmatpush.msra.mxu0 %v871
        %903 = vmatpush.msra.mxu0 %v870
        %904 = vmatpush.msra.mxu0 %v869
        %905 = vmatmul.f32.gmra.mxu0 %v824
        %v906 = vpop.f32.mrf.mxu0
        %v907 = vadd.f32 %v887, %v906
        %908 = vmatmul.f32.gmra.mxu0 %v825
        %v909 = vpop.f32.mrf.mxu0
        %v910 = vadd.f32 %v887, %v909
        %911 = vdwg.mxu0
        %v912 = vld [vmem:[%s663] sm:$0xff]
        %v913 = vld [vmem:[%s663 + $0x8] sm:$0xff]
        %v914 = vmul.f32 %v907, 0.5
        %v915 = vmul.f32 %v910, 0.5
        %v916 = vmul.f32 %v914, 1.442695
        %v917 = vpow.pop %v916
        %v918 = vmul.f32 %v915, 1.442695
        %v919 = vpow.pop %v918
        %v920 = vmul.f32 %v912, %v917
        %v921 = vmul.f32 %v913, %v919
        %v922 = vadd.f32 %v864, %v920
        %v923 = vadd.f32 %v867, %v921
        %v924 = vld [vmem:[#allocation11] sm:$0xff]
        %v925 = vld [vmem:[#allocation11 + $0x8] sm:$0xff]
        %v926 = vld [vmem:[#allocation11 + $0x10] sm:$0xff]
        %v927 = vld [vmem:[#allocation11 + $0x18] sm:$0xff]
        %v928 = vld [vmem:[#allocation11 + $0x20] sm:$0xff]
        %v929 = vld [vmem:[#allocation11 + $0x28] sm:$0xff]
        %v930 = vld [vmem:[#allocation11 + $0x30] sm:$0xff]
        %v931 = vld [vmem:[#allocation11 + $0x38] sm:$0xff]
        %v932 = vld [vmem:[#allocation11 + $0x40] sm:$0xff]
        %v933 = vld [vmem:[#allocation11 + $0x48] sm:$0xff]
        %v934 = vld [vmem:[#allocation11 + $0x50] sm:$0xff]
        %v935 = vld [vmem:[#allocation11 + $0x58] sm:$0xff]
        %v936 = vld [vmem:[#allocation11 + $0x60] sm:$0xff]
        %v937 = vld [vmem:[#allocation11 + $0x68] sm:$0xff]
        %v938 = vld [vmem:[#allocation11 + $0x70] sm:$0xff]
        %v939 = vld [vmem:[#allocation11 + $0x78] sm:$0xff]
        %v940 = vld [vmem:[%s9] sm:$0x1]
        %v942 = vperm.slane %v940, 0
        %944 = vmatpush.msra.mxu0 %v939
        %945 = vmatpush.msra.mxu0 %v938
        %946 = vmatpush.msra.mxu0 %v937
        %947 = vmatpush.msra.mxu0 %v936
        %948 = vmatpush.msra.mxu0 %v935
        %949 = vmatpush.msra.mxu0 %v934
        %950 = vmatpush.msra.mxu0 %v933
        %951 = vmatpush.msra.mxu0 %v932
        %952 = vmatpush.msra.mxu0 %v931
        %953 = vmatpush.msra.mxu0 %v930
        %954 = vmatpush.msra.mxu0 %v929
        %955 = vmatpush.msra.mxu0 %v928
        %956 = vmatpush.msra.mxu0 %v927
        %957 = vmatpush.msra.mxu0 %v926
        %958 = vmatpush.msra.mxu0 %v925
        %959 = vmatpush.msra.mxu0 %v924
        %960 = vmatmul.f32.gmra.mxu0 %v922
        %v961 = vpop.f32.mrf.mxu0
        %v962 = vadd.f32 %v942, %v961
        %963 = vmatmul.f32.gmra.mxu0 %v923
        %v964 = vpop.f32.mrf.mxu0
        %v965 = vadd.f32 %v942, %v964
        %966 = vdwg.mxu0
        %v967 = vtanh.pop %v962
        %v968 = vtanh.pop %v965
        %v969 = vld [vmem:[#allocation13] sm:$0xff]
        %v970 = vld [vmem:[#allocation13 + $0x8] sm:$0xff]
        %v971 = vld [vmem:[#allocation13 + $0x10] sm:$0xff]
        %v972 = vld [vmem:[#allocation13 + $0x18] sm:$0xff]
        %v973 = vld [vmem:[#allocation13 + $0x20] sm:$0xff]
        %v974 = vld [vmem:[#allocation13 + $0x28] sm:$0xff]
        %v975 = vld [vmem:[#allocation13 + $0x30] sm:$0xff]
        %v976 = vld [vmem:[#allocation13 + $0x38] sm:$0xff]
        %v977 = vld [vmem:[#allocation13 + $0x40] sm:$0xff]
        %v978 = vld [vmem:[#allocation13 + $0x48] sm:$0xff]
        %v979 = vld [vmem:[#allocation13 + $0x50] sm:$0xff]
        %v980 = vld [vmem:[#allocation13 + $0x58] sm:$0xff]
        %v981 = vld [vmem:[#allocation13 + $0x60] sm:$0xff]
        %v982 = vld [vmem:[#allocation13 + $0x68] sm:$0xff]
        %v983 = vld [vmem:[#allocation13 + $0x70] sm:$0xff]
        %v984 = vld [vmem:[#allocation13 + $0x78] sm:$0xff]
        %v985 = vld [vmem:[%s11] sm:$0x1]
        %v987 = vperm.slane %v985, 0
        %989 = vmatpush.msra.mxu0 %v984
        %990 = vmatpush.msra.mxu0 %v983
        %991 = vmatpush.msra.mxu0 %v982
        %992 = vmatpush.msra.mxu0 %v981
        %993 = vmatpush.msra.mxu0 %v980
        %994 = vmatpush.msra.mxu0 %v979
        %995 = vmatpush.msra.mxu0 %v978
        %996 = vmatpush.msra.mxu0 %v977
        %997 = vmatpush.msra.mxu0 %v976
        %998 = vmatpush.msra.mxu0 %v975
        %999 = vmatpush.msra.mxu0 %v974
        %1000 = vmatpush.msra.mxu0 %v973
        %1001 = vmatpush.msra.mxu0 %v972
        %1002 = vmatpush.msra.mxu0 %v971
        %1003 = vmatpush.msra.mxu0 %v970
        %1004 = vmatpush.msra.mxu0 %v969
        %1005 = vmatmul.f32.gmra.mxu0 %v967
        %v1006 = vpop.f32.mrf.mxu0
        %v1007 = vadd.f32 %v987, %v1006
        %1008 = vmatmul.f32.gmra.mxu0 %v968
        %v1009 = vpop.f32.mrf.mxu0
        %v1010 = vadd.f32 %v987, %v1009
        %1011 = vdwg.mxu0
        %v1012 = vld [vmem:[#allocation14] sm:$0xff]
        %v1013 = vld [vmem:[#allocation14 + $0x8] sm:$0xff]
        %v1014 = vld [vmem:[#allocation14 + $0x10] sm:$0xff]
        %v1015 = vld [vmem:[#allocation14 + $0x18] sm:$0xff]
        %v1016 = vld [vmem:[#allocation14 + $0x20] sm:$0xff]
        %v1017 = vld [vmem:[#allocation14 + $0x28] sm:$0xff]
        %v1018 = vld [vmem:[#allocation14 + $0x30] sm:$0xff]
        %v1019 = vld [vmem:[#allocation14 + $0x38] sm:$0xff]
        %v1020 = vld [vmem:[#allocation14 + $0x40] sm:$0xff]
        %v1021 = vld [vmem:[#allocation14 + $0x48] sm:$0xff]
        %v1022 = vld [vmem:[#allocation14 + $0x50] sm:$0xff]
        %v1023 = vld [vmem:[#allocation14 + $0x58] sm:$0xff]
        %v1024 = vld [vmem:[#allocation14 + $0x60] sm:$0xff]
        %v1025 = vld [vmem:[#allocation14 + $0x68] sm:$0xff]
        %v1026 = vld [vmem:[#allocation14 + $0x70] sm:$0xff]
        %v1027 = vld [vmem:[#allocation14 + $0x78] sm:$0xff]
        %v1028 = vld [vmem:[%s13] sm:$0x1]
        %v1030 = vperm.slane %v1028, 0
        %1032 = vmatpush.msra.mxu0 %v1027
        %1033 = vmatpush.msra.mxu0 %v1026
        %1034 = vmatpush.msra.mxu0 %v1025
        %1035 = vmatpush.msra.mxu0 %v1024
        %1036 = vmatpush.msra.mxu0 %v1023
        %1037 = vmatpush.msra.mxu0 %v1022
        %1038 = vmatpush.msra.mxu0 %v1021
        %1039 = vmatpush.msra.mxu0 %v1020
        %1040 = vmatpush.msra.mxu0 %v1019
        %1041 = vmatpush.msra.mxu0 %v1018
        %1042 = vmatpush.msra.mxu0 %v1017
        %1043 = vmatpush.msra.mxu0 %v1016
        %1044 = vmatpush.msra.mxu0 %v1015
        %1045 = vmatpush.msra.mxu0 %v1014
        %1046 = vmatpush.msra.mxu0 %v1013
        %1047 = vmatpush.msra.mxu0 %v1012
        %1048 = vmatmul.f32.gmra.mxu0 %v967
        %v1049 = vpop.f32.mrf.mxu0
        %v1050 = vadd.f32 %v1030, %v1049
        %1051 = vmatmul.f32.gmra.mxu0 %v968
        %v1052 = vpop.f32.mrf.mxu0
        %v1053 = vadd.f32 %v1030, %v1052
        %1054 = vdwg.mxu0
        %1055 = vst [vmem:[%s743] sm:$0xff] %v922
        %1056 = vst [vmem:[%s743 + $0x8] sm:$0xff] %v923
        %1057 = vst [vmem:[%s750] sm:$0xff] %v864
        %1058 = vst [vmem:[%s750 + $0x8] sm:$0xff] %v867
        %1059 = vst [vmem:[%s757] sm:$0xff] %v907
        %1060 = vst [vmem:[%s757 + $0x8] sm:$0xff] %v910
        %1061 = vst [vmem:[%s764] sm:$0xff] %v1007
        %1062 = vst [vmem:[%s764 + $0x8] sm:$0xff] %v1010
        %1063 = vst [vmem:[%s771] sm:$0xff] %v1050
        %1064 = vst [vmem:[%s771 + $0x8] sm:$0xff] %v1053
        %s1065 = sand.u32 %s360, 1
        %s1066 = scalar_lea.sflag [#allocation4], %s1065
        %s1067 = sand.u32 %s360, 1
        %s1068 = smul.addr %s1067, 16
        %s1069 = scalar_lea.vmem [#allocation16], %s1068
        %s1070 = sand.u32 %s48, 1
        %s1071 = scalar_lea.sflag [#allocation18], %s1070
        %s1072 = sand.u32 %s386, 1
        %s1073 = smul.addr %s1072, 16
        %s1074 = scalar_lea.vmem [#allocation17], %s1073
        %s1075 = sand.u32 %s48, 1
        %s1076 = scalar_lea.sflag [#allocation18], %s1075
        %s1077 = sand.u32 %s412, 1
        %s1078 = smul.addr %s1077, 16
        %s1079 = scalar_lea.vmem [#allocation19], %s1078
        %s1080 = sand.u32 %s48, 1
        %s1081 = scalar_lea.sflag [#allocation21], %s1080
        %s1082 = sand.u32 %s438, 1
        %s1083 = smul.addr %s1082, 16
        %s1084 = scalar_lea.vmem [#allocation20], %s1083
        %s1085 = sand.u32 %s48, 1
        %s1086 = scalar_lea.sflag [#allocation21], %s1085
        %s1087 = sand.u32 %s464, 1
        %s1088 = smul.addr %s1087, 16
        %s1089 = scalar_lea.vmem [#allocation22], %s1088
        // Predicated region
        $region109: #{tpu_custom_call.1} parent=75 // pred_check
          %p1090 = pneg %p370
        $region110: #{tpu_custom_call.1} parent=75 // pred_check_branch
          %1092 = sbr.rel (%p1090) target = $region112
        $region111: #{tpu_custom_call.1} parent=75 // pred_region
          %s1093 = smul.u32 2, %s48
          %1095 = vsyncadd %s1066, 0
          %s1096 = smul.addr %s1093, 8
          %s1097 = scalar_lea.hbm %s14, %s1096
          %s1098 = sshll.u32 %s1069, 4
          %s1099 = int_to_ptr.vmem [resolvable:$true] %s1098
          %s1100 = sshll.u32 %s1097, 4
          %s1101 = int_to_ptr.hbm [resolvable:$true] %s1100
          %1106 = dma.vmem_to_hbm [thread:$0]  %s1099, 256, %s1101, %s1066, 128, 128, 8
        $region112: #{tpu_custom_call.1} parent=75 // pred_fallthru
          _
        // Predicated region
        $region113: #{tpu_custom_call.1} parent=75 // pred_check
          %p1107 = pneg %p396
        $region114: #{tpu_custom_call.1} parent=75 // pred_check_branch
          %1109 = sbr.rel (%p1107) target = $region116
        $region115: #{tpu_custom_call.1} parent=75 // pred_region
          %s1110 = smul.u32 2, %s48
          %1112 = vsyncadd %s1071, 0
          %s1113 = smul.addr %s1110, 8
          %s1114 = scalar_lea.hbm %s15, %s1113
          %s1115 = sshll.u32 %s1074, 4
          %s1116 = int_to_ptr.vmem [resolvable:$true] %s1115
          %s1117 = sshll.u32 %s1114, 4
          %s1118 = int_to_ptr.hbm [resolvable:$true] %s1117
          %1123 = dma.vmem_to_hbm [thread:$0]  %s1116, 256, %s1118, %s1071, 128, 128, 8
        $region116: #{tpu_custom_call.1} parent=75 // pred_fallthru
          _
        // Predicated region
        $region117: #{tpu_custom_call.1} parent=75 // pred_check
          %p1124 = pneg %p422
        $region118: #{tpu_custom_call.1} parent=75 // pred_check_branch
          %1126 = sbr.rel (%p1124) target = $region120
        $region119: #{tpu_custom_call.1} parent=75 // pred_region
          %s1127 = smul.u32 2, %s48
          %1129 = vsyncadd %s1076, 0
          %s1130 = smul.addr %s1127, 8
          %s1131 = scalar_lea.hbm %s16, %s1130
          %s1132 = sshll.u32 %s1079, 4
          %s1133 = int_to_ptr.vmem [resolvable:$true] %s1132
          %s1134 = sshll.u32 %s1131, 4
          %s1135 = int_to_ptr.hbm [resolvable:$true] %s1134
          %1140 = dma.vmem_to_hbm [thread:$0]  %s1133, 256, %s1135, %s1076, 128, 128, 8
        $region120: #{tpu_custom_call.1} parent=75 // pred_fallthru
          _
        // Predicated region
        $region121: #{tpu_custom_call.1} parent=75 // pred_check
          %p1141 = pneg %p448
        $region122: #{tpu_custom_call.1} parent=75 // pred_check_branch
          %1143 = sbr.rel (%p1141) target = $region124
        $region123: #{tpu_custom_call.1} parent=75 // pred_region
          %s1144 = smul.u32 2, %s48
          %1146 = vsyncadd %s1081, 0
          %s1147 = smul.addr %s1144, 8
          %s1148 = scalar_lea.hbm %s17, %s1147
          %s1149 = sshll.u32 %s1084, 4
          %s1150 = int_to_ptr.vmem [resolvable:$true] %s1149
          %s1151 = sshll.u32 %s1148, 4
          %s1152 = int_to_ptr.hbm [resolvable:$true] %s1151
          %1157 = dma.vmem_to_hbm [thread:$0]  %s1150, 256, %s1152, %s1081, 128, 128, 8
        $region124: #{tpu_custom_call.1} parent=75 // pred_fallthru
          _
        // Predicated region
        $region125: #{tpu_custom_call.1} parent=75 // pred_check
          %p1158 = pneg %p474
        $region126: #{tpu_custom_call.1} parent=75 // pred_check_branch
          %1160 = sbr.rel (%p1158) target = $region128
        $region127: #{tpu_custom_call.1} parent=75 // pred_region
          %s1161 = smul.u32 2, %s48
          %1163 = vsyncadd %s1086, 0
          %s1164 = smul.addr %s1161, 8
          %s1165 = scalar_lea.hbm %s18, %s1164
          %s1166 = sshll.u32 %s1089, 4
          %s1167 = int_to_ptr.vmem [resolvable:$true] %s1166
          %s1168 = sshll.u32 %s1165, 4
          %s1169 = int_to_ptr.hbm [resolvable:$true] %s1168
          %1174 = dma.vmem_to_hbm [thread:$0]  %s1167, 256, %s1169, %s1086, 128, 128, 8
        $region128: #{tpu_custom_call.1} parent=75 // pred_fallthru
          _
      $region76: #{tpu_custom_call.1} parent=5 // pred_fallthru
        _
      %p1175 = scmp.le.s32.totalorder 2, %s43
      // Predicated region
      $region129: #{tpu_custom_call.1} parent=5 // pred_check
        %p1176 = pneg %p1175
      $region130: #{tpu_custom_call.1} parent=5 // pred_check_branch
        %1178 = sbr.rel (%p1176) target = $region132
      $region131: #{tpu_custom_call.1} parent=5 // pred_region
        %s1179 = ssub.s32 %s43, 2
        // Predicated region
        $region133: #{tpu_custom_call.1} parent=131 // pred_check
          %p1180 = pneg %p376
        $region134: #{tpu_custom_call.1} parent=131 // pred_check_branch
          %1182 = sbr.rel (%p1180) target = $region136
        $region135: #{tpu_custom_call.1} parent=131 // pred_region
          %s1183 = sand.u32 %s361, 1
          %s1184 = scalar_lea.sflag [#allocation4], %s1183
          %s1185 = sand.u32 %s361, 1
          %s1186 = smul.addr %s1185, 16
          %s1187 = scalar_lea.vmem [#allocation16], %s1186
          %1189 = dma.done %s1184, 256
        $region136: #{tpu_custom_call.1} parent=131 // pred_fallthru
          _
        // Predicated region
        $region137: #{tpu_custom_call.1} parent=131 // pred_check
          %p1190 = pneg %p402
        $region138: #{tpu_custom_call.1} parent=131 // pred_check_branch
          %1192 = sbr.rel (%p1190) target = $region140
        $region139: #{tpu_custom_call.1} parent=131 // pred_region
          %s1193 = sand.u32 %s49, 1
          %s1194 = scalar_lea.sflag [#allocation18], %s1193
          %s1195 = sand.u32 %s387, 1
          %s1196 = smul.addr %s1195, 16
          %s1197 = scalar_lea.vmem [#allocation17], %s1196
          %1199 = dma.done %s1194, 256
        $region140: #{tpu_custom_call.1} parent=131 // pred_fallthru
          _
        // Predicated region
        $region141: #{tpu_custom_call.1} parent=131 // pred_check
          %p1200 = pneg %p428
        $region142: #{tpu_custom_call.1} parent=131 // pred_check_branch
          %1202 = sbr.rel (%p1200) target = $region144
        $region143: #{tpu_custom_call.1} parent=131 // pred_region
          %s1203 = sand.u32 %s49, 1
          %s1204 = scalar_lea.sflag [#allocation18], %s1203
          %s1205 = sand.u32 %s413, 1
          %s1206 = smul.addr %s1205, 16
          %s1207 = scalar_lea.vmem [#allocation19], %s1206
          %1209 = dma.done %s1204, 256
        $region144: #{tpu_custom_call.1} parent=131 // pred_fallthru
          _
        // Predicated region
        $region145: #{tpu_custom_call.1} parent=131 // pred_check
          %p1210 = pneg %p454
        $region146: #{tpu_custom_call.1} parent=131 // pred_check_branch
          %1212 = sbr.rel (%p1210) target = $region148
        $region147: #{tpu_custom_call.1} parent=131 // pred_region
          %s1213 = sand.u32 %s49, 1
          %s1214 = scalar_lea.sflag [#allocation21], %s1213
          %s1215 = sand.u32 %s439, 1
          %s1216 = smul.addr %s1215, 16
          %s1217 = scalar_lea.vmem [#allocation20], %s1216
          %1219 = dma.done %s1214, 256
        $region148: #{tpu_custom_call.1} parent=131 // pred_fallthru
          _
        // Predicated region
        $region149: #{tpu_custom_call.1} parent=131 // pred_check
          %p1220 = pneg %p480
        $region150: #{tpu_custom_call.1} parent=131 // pred_check_branch
          %1222 = sbr.rel (%p1220) target = $region152
        $region151: #{tpu_custom_call.1} parent=131 // pred_region
          %s1223 = sand.u32 %s49, 1
          %s1224 = scalar_lea.sflag [#allocation21], %s1223
          %s1225 = sand.u32 %s465, 1
          %s1226 = smul.addr %s1225, 16
          %s1227 = scalar_lea.vmem [#allocation22], %s1226
          %1229 = dma.done %s1224, 256
        $region152: #{tpu_custom_call.1} parent=131 // pred_fallthru
          _
      $region132: #{tpu_custom_call.1} parent=5 // pred_fallthru
        _
    $region6: #{tpu_custom_call.1} parent=1 // loop_footer
      %s47 = sadd.s32 1, %s43
    $region7: #{tpu_custom_call.1} parent=1 // loop_footer_branch
      %42 = sbr.rel target = $region3
    $region8: #{tpu_custom_call.1} parent=1 // loop_exit
      _
    %1230 = vsyncpa [#allocation3], 1
    %s1231 = scalar_lea.sflag [#allocation3], 1
    %1232 = vsyncpa %s1231, 1
    %1233 = vsyncpa [#allocation6], 1
    %s1234 = scalar_lea.sflag [#allocation6], 1
    %1235 = vsyncpa %s1234, 1
    %1236 = vsyncpa [#allocation9], 1
    %1237 = vsyncpa [#allocation12], 1
    %1238 = vsyncpa [#allocation15], 1
    %1239 = vsyncpa [#allocation4], 1
    %s1240 = scalar_lea.sflag [#allocation4], 1
    %1241 = vsyncpa %s1240, 1
    %1242 = vsyncpa [#allocation18], 1
    %s1243 = scalar_lea.sflag [#allocation18], 1
    %1244 = vsyncpa %s1243, 1
    %1245 = vsyncpa [#allocation21], 1
    %s1246 = scalar_lea.sflag [#allocation21], 1
    %1247 = vsyncpa %s1246, 1

</llo_original>
